<compile_context>
chip_gen: v6e
topology: v6e:2x2x1
jax: 0.10.0
libtpu: 0.0.40
codegen_flags: <defaults>
</compile_context>

<pallas_src>
import numpy as np
import jax
import jax.numpy as jnp
from jax.experimental import pallas as pl
from jax.experimental.pallas import tpu as pltpu


# ----------------------------- Pallas kernel ------------------------------ #
def dcgru_decoder_kernel(x_ref, h_ref, L_ref, wh_ref, px_ref, hout_ref, out_ref):
    """One DCGRU cell step + output projection for the whole batch.

    x_ref   : (N, B)        decoder inputs, batch along lanes, f32
    h_ref   : (B*N, H)      previous hidden state, batch stacked along rows, f32
    L_ref   : (N, N)        scaled Laplacian support, f32
    wh_ref  : (3H, 3H)      state-path Chebyshev weights [Whr | Whu | Whc], f32
    px_ref  : (10, 2H)      packed small params:
                              rows 0-2 [Wxr|Wxu], row 3 [br|bu],
                              rows 4-6 Wxc (lanes 0:H), row 7 bc,
                              row 8 W_proj^T, row 9 b_proj (broadcast)
    hout_ref: (B, N*H)      new hidden state, lane-dense (N*H = 512), f32
    out_ref : (B*N, 1)      projected output, f32
    """
    N, B = x_ref.shape
    H = h_ref.shape[1]

    L = L_ref[...]                          # (N, N)
    x_nb = x_ref[...]                       # (N, B)
    h_rows = h_ref[...]                     # (B*N, H)

    wh = wh_ref[...]                        # (3H, 3H)
    wh_ru = wh[:, 0:2 * H]                  # (3H, 2H)
    wh_c = wh[:, 2 * H:3 * H]               # (3H, H)

    px = px_ref[...]                        # (10, 2H)
    wx_ru = px[0:3, :]                      # (3, 2H)
    b_ru = px[3:4, :]                       # (1, 2H)
    wx_c = px[4:7, 0:H]                     # (3, H)
    b_c = px[7:8, 0:H]                      # (1, H)
    w_proj = px[8:9, 0:H]                   # (1, H)
    b_proj = px[9:10, 0:1]                  # (1, 1)

    # ---- fused Chebyshev diffusion of [h_b0 | h_b1 | x_cols] (batch on lanes) ----
    h_lane = jnp.concatenate(
        [h_rows[b * N:(b + 1) * N, :] for b in range(B)], axis=1)      # (N, B*H)
    Z0 = jnp.concatenate([h_lane, x_nb], axis=1)                       # (N, B*H + B)
    Z1 = jnp.dot(L, Z0, preferred_element_type=jnp.float32)
    Z2 = 2.0 * jnp.dot(L, Z1, preferred_element_type=jnp.float32) - Z0

    def h_block(Z, b):                      # diffused hidden block of batch b
        return Z[:, b * H:(b + 1) * H]      # (N, H)

    def x_col(Z, b):                        # diffused input column of batch b
        return Z[:, B * H + b:B * H + b + 1]   # (N, 1)

    # row-stacked (B*N, 3H) operand for the state-path weight matmuls
    h_cat = jnp.concatenate(
        [jnp.concatenate([h_block(Z0, b), h_block(Z1, b), h_block(Z2, b)], axis=1)
         for b in range(B)], axis=0)                                   # (B*N, 3H)

    def x_contrib(wx):
        # rank-1 VPU broadcasts (replaces the K=1 column of an MXU matmul),
        # stacked over the batch along rows -> (B*N, out)
        return jnp.concatenate(
            [x_col(Z0, b) * wx[0:1, :]
             + x_col(Z1, b) * wx[1:2, :]
             + x_col(Z2, b) * wx[2:3, :] for b in range(B)], axis=0)

    # ---- fused r|u gate: one (B*N, 3H) @ (3H, 2H) matmul ----
    ru = jax.nn.sigmoid(
        jnp.dot(h_cat, wh_ru, preferred_element_type=jnp.float32)
        + x_contrib(wx_ru) + b_ru)                                     # (B*N, 2H)
    r = ru[:, 0:H]
    u = ru[:, H:2 * H]

    # ---- candidate state: diffuse r*h, then one (B*N, 3H) @ (3H, H) matmul ----
    rh = r * h_rows                                                    # (B*N, H)
    Y0 = jnp.concatenate(
        [rh[b * N:(b + 1) * N, :] for b in range(B)], axis=1)          # (N, B*H)
    Y1 = jnp.dot(L, Y0, preferred_element_type=jnp.float32)
    Y2 = 2.0 * jnp.dot(L, Y1, preferred_element_type=jnp.float32) - Y0
    c_cat = jnp.concatenate(
        [jnp.concatenate([Y0[:, b * H:(b + 1) * H],
                          Y1[:, b * H:(b + 1) * H],
                          Y2[:, b * H:(b + 1) * H]], axis=1)
         for b in range(B)], axis=0)                                   # (B*N, 3H)
    c = jnp.tanh(
        jnp.dot(c_cat, wh_c, preferred_element_type=jnp.float32)
        + x_contrib(wx_c) + b_c)                                       # (B*N, H)

    # ---- GRU update (all f32 elementwise) ----
    h_new = u * h_rows + (1.0 - u) * c                                 # (B*N, H)

    # ---- lane-dense hidden store: (B, N*H), last dim 512 = 4*128 ----
    # Relayout via row slices + minor-dim concatenation (XLU has slack here).
    def flatten_rows(mat, rows):
        return jnp.concatenate([mat[r:r + 1, :] for r in range(rows)], axis=1)

    hout_ref[...] = jnp.concatenate(
        [flatten_rows(h_new[b * N:(b + 1) * N, :], N) for b in range(B)], axis=0)

    # ---- fused H->1 projection: VPU broadcast + lane reduce (no MXU) ----
    out_ref[...] = jnp.sum(h_new * w_proj, axis=-1, keepdims=True) + b_proj


# ----------------------------- JAX wrapper -------------------------------- #
def prepare_kernel_params(L_scaled, params):
    """One-time packing, hoisted out of the per-step forward."""
    Whr, Whu, Whc, Wxr, Wxu, Wxc, br, bu, bc, W_proj, b_proj = params
    H = Whr.shape[-1]
    f32 = jnp.float32
    wh_all = jnp.concatenate([Whr, Whu, Whc], axis=1).astype(f32)       # (3H, 3H)
    zpad3 = jnp.zeros((3, H), f32)
    zpad1 = jnp.zeros((1, H), f32)
    px_all = jnp.concatenate([
        jnp.concatenate([Wxr, Wxu], axis=1),                            # rows 0-2
        jnp.concatenate([br, bu], axis=1),                              # row 3
        jnp.concatenate([Wxc, zpad3], axis=1),                          # rows 4-6
        jnp.concatenate([bc, zpad1], axis=1),                           # row 7
        jnp.concatenate([W_proj.reshape(1, H), zpad1], axis=1),         # row 8
        jnp.broadcast_to(b_proj.reshape(1, 1), (1, 2 * H)),             # row 9
    ], axis=0).astype(f32)                                              # (10, 2H)
    return (L_scaled.astype(f32), wh_all, px_all)


def decoder_forward(inputs, hidden_state, kparams):
    """Mirrors DecoderModel.forward (num_rnn_layers = 1, output_dim = 1).

    inputs       : (B, num_nodes)
    hidden_state : (1, B, num_nodes * H)
    returns (output (B, num_nodes), hidden (1, B, num_nodes * H))
    """
    L, wh_all, px_all = kparams
    B, N = inputs.shape
    NH = hidden_state.shape[-1]
    H = NH // N

    # Wrapper-side layout plumbing (tiny XLA ops): batch on lanes for x,
    # batch stacked on rows for h.
    x_nb = inputs.astype(jnp.float32).T                                 # (N, B)
    h_rows = hidden_state[0].astype(jnp.float32).reshape(B * N, H)      # (B*N, H)

    def full_spec(shape):
        nd = len(shape)
        return pl.BlockSpec(shape, lambda i: (0,) * nd)

    h_new, proj = pl.pallas_call(
        dcgru_decoder_kernel,
        grid=(1,),                          # single invocation, single TensorCore
        in_specs=[
            full_spec(x_nb.shape),          # x      (N, B)
            full_spec(h_rows.shape),        # h      (B*N, H)
            full_spec(L.shape),             # L      (N, N)
            full_spec(wh_all.shape),        # Wh_all (3H, 3H)
            full_spec(px_all.shape),        # packed small params (10, 2H)
        ],
        out_specs=(
            full_spec((B, N * H)),          # lane-dense hidden state
            full_spec((B * N, 1)),          # projected output
        ),
        out_shape=(
            jax.ShapeDtypeStruct((B, N * H), jnp.float32),
            jax.ShapeDtypeStruct((B * N, 1), jnp.float32),
        ),
        compiler_params=pltpu.CompilerParams(
            dimension_semantics=("arbitrary",),
        ),
    )(x_nb, h_rows, L, wh_all, px_all)

    output = proj.reshape(B, N)
    hidden = h_new[None, :, :]              # (1, B, N*H)
    return output, hidden


decoder_forward_jit = jax.jit(decoder_forward)


# ---------------------- pure-JAX reference (checking) ---------------------- #
def decoder_reference(inputs, hidden_state, L, params):
    """Canonical DCGRU math (concat([x, h]) gconv, fused r/u gate) in f32."""
    Whr, Whu, Whc, Wxr, Wxu, Wxc, br, bu, bc, W_proj, b_proj = params
    B, N = inputs.shape
    H = Whr.shape[-1]
    x = inputs.reshape(B, N, 1)
    h = hidden_state[0].reshape(B, N, H)

    def gconv(state, Wh, Wx, b):
        out = Wh.shape[-1]
        Wfull = jnp.concatenate([Wx[:, None, :], Wh.reshape(3, H, out)], axis=1)  # (3, D, out)
        z0 = jnp.concatenate([x, state], axis=-1)                                  # (B, N, D)
        z1 = jnp.einsum('nm,bmd->bnd', L, z0)
        z2 = 2.0 * jnp.einsum('nm,bmd->bnd', L, z1) - z0
        return (jnp.einsum('bnd,do->bno', z0, Wfull[0])
                + jnp.einsum('bnd,do->bno', z1, Wfull[1])
                + jnp.einsum('bnd,do->bno', z2, Wfull[2]) + b)

    ru = jax.nn.sigmoid(gconv(h,
                              jnp.concatenate([Whr, Whu], axis=1),
                              jnp.concatenate([Wxr, Wxu], axis=1),
                              jnp.concatenate([br, bu], axis=1)))
    r, u = ru[..., :H], ru[..., H:]
    c = jnp.tanh(gconv(r * h, Whc, Wxc, bc))
    h_new = u * h + (1.0 - u) * c
    out = (h_new.reshape(B * N, H) @ W_proj + b_proj).reshape(B, N)
    return out, h_new.reshape(1, B, N * H)


# ---------------------------- graph utilities ------------------------------ #
def scaled_laplacian(adj):
    """calculate_scaled_laplacian(adj, lambda_max=None) — filter_type='laplacian'."""
    adj = np.maximum(adj, adj.T)
    d = adj.sum(axis=1)
    d_inv_sqrt = np.where(d > 0, np.power(d, -0.5, where=d > 0), 0.0)
    L = np.eye(adj.shape[0]) - (d_inv_sqrt[:, None] * adj * d_inv_sqrt[None, :])
    lam_max = float(np.linalg.eigvalsh(L).max())
    return ((2.0 / lam_max) * L - np.eye(adj.shape[0])).astype(np.float32)


# --------------------------------- main ------------------------------------ #
if __name__ == "__main__":
    # Small shapes consistent with the module's forward:
    #   batch B = 2, num_nodes N = 16, rnn_units H = 32, output_dim = 1,
    #   max_diffusion_step = 2 (-> 3 Chebyshev terms), num_rnn_layers = 1.
    B, N, H = 2, 16, 32

    key = jax.random.PRNGKey(0)
    ks = jax.random.split(key, 11)

    # Deterministic synthetic adjacency + scaled Laplacian support.
    adj = np.array(jax.random.uniform(ks[0], (N, N), dtype=jnp.float32))
    np.fill_diagonal(adj, 0.0)
    L_scaled = jnp.asarray(scaled_laplacian(adj))

    # Parameters (in-script init; gate bias_start = 1.0, candidate bias_start = 0.0).
    Whr = 0.1 * jax.random.normal(ks[1], (3 * H, H), dtype=jnp.float32)
    Whu = 0.1 * jax.random.normal(ks[2], (3 * H, H), dtype=jnp.float32)
    Whc = 0.1 * jax.random.normal(ks[3], (3 * H, H), dtype=jnp.float32)
    Wxr = 0.1 * jax.random.normal(ks[4], (3, H), dtype=jnp.float32)
    Wxu = 0.1 * jax.random.normal(ks[5], (3, H), dtype=jnp.float32)
    Wxc = 0.1 * jax.random.normal(ks[6], (3, H), dtype=jnp.float32)
    br = jnp.ones((1, H), dtype=jnp.float32)
    bu = jnp.ones((1, H), dtype=jnp.float32)
    bc = jnp.zeros((1, H), dtype=jnp.float32)
    W_proj = 0.1 * jax.random.normal(ks[7], (H, 1), dtype=jnp.float32)
    b_proj = 0.1 * jax.random.normal(ks[8], (1, 1), dtype=jnp.float32)
    params = (Whr, Whu, Whc, Wxr, Wxu, Wxc, br, bu, bc, W_proj, b_proj)

    # Decoder inputs: (B, num_nodes * output_dim) and (1, B, num_nodes * H).
    inputs = jax.random.normal(ks[9], (B, N), dtype=jnp.float32)
    hidden0 = jax.random.normal(ks[10], (1, B, N * H), dtype=jnp.float32)

    # One-time packing (Wh concat, small-param packing) hoisted out of the step.
    kparams = prepare_kernel_params(L_scaled, params)

    out, hidden = decoder_forward_jit(inputs, hidden0, kparams)
    out, hidden = jax.block_until_ready((out, hidden))

    # ---- single-step check against the pure-JAX f32 reference ----
    out_ref, hidden_ref = decoder_reference(inputs, hidden0, L_scaled, params)
    assert out.shape == (B, N) and hidden.shape == (1, B, N * H)
    np.testing.assert_allclose(np.asarray(out), np.asarray(out_ref), atol=2e-2, rtol=2e-2)
    np.testing.assert_allclose(np.asarray(hidden), np.asarray(hidden_ref), atol=2e-2, rtol=2e-2)

    # ---- multi-step rollout drift check (hidden state recycled each step) ----
    inp_k, hid_k = inputs, hidden0
    inp_r, hid_r = inputs, hidden0
    for _ in range(3):
        out_k, hid_k = decoder_forward_jit(inp_k, hid_k, kparams)
        out_r, hid_r = decoder_reference(inp_r, hid_r, L_scaled, params)
        inp_k, inp_r = out_k, out_r
    out_k, hid_k = jax.block_until_ready((out_k, hid_k))
    np.testing.assert_allclose(np.asarray(out_k), np.asarray(out_r), atol=5e-2, rtol=5e-2)
    np.testing.assert_allclose(np.asarray(hid_k), np.asarray(hid_r), atol=5e-2, rtol=5e-2)

    print("KERNEL_OK")
</pallas_src>

<mosaic_0001>
module attributes {stable_mosaic.version = 11 : i64} {
  func.func @dcgru_decoder_kernel(%arg0: i32, %arg1: memref<16x2xf32, #tpu.memory_space<vmem>>, %arg2: memref<32x32xf32, #tpu.memory_space<vmem>>, %arg3: memref<16x16xf32, #tpu.memory_space<vmem>>, %arg4: memref<96x96xf32, #tpu.memory_space<vmem>>, %arg5: memref<10x64xf32, #tpu.memory_space<vmem>>, %arg6: memref<2x512xf32, #tpu.memory_space<vmem>>, %arg7: memref<32x1xf32, #tpu.memory_space<vmem>>) attributes {dimension_semantics = [#tpu.dimension_semantics<arbitrary>], iteration_bounds = array<i64: 1>, scalar_prefetch = 0 : i64, scratch_operands = 0 : i64, tpu.core_type = #tpu.core_type<tc>, window_params = [{pipeline_mode = #tpu.pipeline_mode<synchronous>, transform_indices = @transform_0, window_bounds = array<i64: 16, 2>}, {pipeline_mode = #tpu.pipeline_mode<synchronous>, transform_indices = @transform_1, window_bounds = array<i64: 32, 32>}, {pipeline_mode = #tpu.pipeline_mode<synchronous>, transform_indices = @transform_2, window_bounds = array<i64: 16, 16>}, {pipeline_mode = #tpu.pipeline_mode<synchronous>, transform_indices = @transform_3, window_bounds = array<i64: 96, 96>}, {pipeline_mode = #tpu.pipeline_mode<synchronous>, transform_indices = @transform_4, window_bounds = array<i64: 10, 64>}, {pipeline_mode = #tpu.pipeline_mode<synchronous>, transform_indices = @transform_5, window_bounds = array<i64: 2, 512>}, {pipeline_mode = #tpu.pipeline_mode<synchronous>, transform_indices = @transform_6, window_bounds = array<i64: 32, 1>}]} {
    %c0 = arith.constant 0 : index
    %c0_0 = arith.constant 0 : index
    %0 = vector.load %arg3[%c0, %c0_0] : memref<16x16xf32, #tpu.memory_space<vmem>>, vector<16x16xf32>
    %c0_1 = arith.constant 0 : index
    %c0_2 = arith.constant 0 : index
    %1 = vector.load %arg1[%c0_1, %c0_2] : memref<16x2xf32, #tpu.memory_space<vmem>>, vector<16x2xf32>
    %c0_3 = arith.constant 0 : index
    %c0_4 = arith.constant 0 : index
    %2 = vector.load %arg2[%c0_3, %c0_4] : memref<32x32xf32, #tpu.memory_space<vmem>>, vector<32x32xf32>
    %c0_5 = arith.constant 0 : index
    %c0_6 = arith.constant 0 : index
    %3 = vector.load %arg4[%c0_5, %c0_6] : memref<96x96xf32, #tpu.memory_space<vmem>>, vector<96x96xf32>
    %4 = vector.extract_strided_slice %3 {offsets = [0, 0], sizes = [96, 64], strides = [1, 1]} : vector<96x96xf32> to vector<96x64xf32>
    %5 = vector.extract_strided_slice %3 {offsets = [0, 64], sizes = [96, 32], strides = [1, 1]} : vector<96x96xf32> to vector<96x32xf32>
    %c0_7 = arith.constant 0 : index
    %c0_8 = arith.constant 0 : index
    %6 = vector.load %arg5[%c0_7, %c0_8] : memref<10x64xf32, #tpu.memory_space<vmem>>, vector<10x64xf32>
    %7 = vector.extract_strided_slice %6 {offsets = [0, 0], sizes = [3, 64], strides = [1, 1]} : vector<10x64xf32> to vector<3x64xf32>
    %8 = vector.extract_strided_slice %6 {offsets = [3, 0], sizes = [1, 64], strides = [1, 1]} : vector<10x64xf32> to vector<1x64xf32>
    %9 = vector.extract_strided_slice %6 {offsets = [4, 0], sizes = [3, 32], strides = [1, 1]} : vector<10x64xf32> to vector<3x32xf32>
    %10 = vector.extract_strided_slice %6 {offsets = [7, 0], sizes = [1, 32], strides = [1, 1]} : vector<10x64xf32> to vector<1x32xf32>
    %11 = vector.extract_strided_slice %6 {offsets = [8, 0], sizes = [1, 32], strides = [1, 1]} : vector<10x64xf32> to vector<1x32xf32>
    %12 = vector.extract_strided_slice %6 {offsets = [9, 0], sizes = [1, 1], strides = [1, 1]} : vector<10x64xf32> to vector<1x1xf32>
    %13 = vector.extract_strided_slice %2 {offsets = [0, 0], sizes = [16, 32], strides = [1, 1]} : vector<32x32xf32> to vector<16x32xf32>
    %14 = vector.extract_strided_slice %2 {offsets = [16, 0], sizes = [16, 32], strides = [1, 1]} : vector<32x32xf32> to vector<16x32xf32>
    %15 = tpu.concatenate %13, %14 in 1 : vector<16x32xf32>, vector<16x32xf32> -> vector<16x64xf32>
    %16 = tpu.concatenate %15, %1 in 1 : vector<16x64xf32>, vector<16x2xf32> -> vector<16x66xf32>
    %cst = arith.constant dense<0.000000e+00> : vector<16x66xf32>
    %17 = tpu.matmul %0, %16, %cst {dimension_numbers = #tpu.dot_dimension_numbers<[1], [0], [0], [1], [0, 0, 1, 1], [], []>} : vector<16x16xf32>, vector<16x66xf32>, vector<16x66xf32> -> vector<16x66xf32>
    %cst_9 = arith.constant dense<0.000000e+00> : vector<16x66xf32>
    %18 = tpu.matmul %0, %17, %cst_9 {dimension_numbers = #tpu.dot_dimension_numbers<[1], [0], [0], [1], [0, 0, 1, 1], [], []>} : vector<16x16xf32>, vector<16x66xf32>, vector<16x66xf32> -> vector<16x66xf32>
    %cst_10 = arith.constant 2.000000e+00 : f32
    %19 = vector.broadcast %cst_10 : f32 to vector<16x66xf32>
    %20 = arith.mulf %19, %18 : vector<16x66xf32>
    %21 = arith.subf %20, %16 : vector<16x66xf32>
    %22 = vector.extract_strided_slice %16 {offsets = [0, 0], sizes = [16, 32], strides = [1, 1]} : vector<16x66xf32> to vector<16x32xf32>
    %23 = vector.extract_strided_slice %17 {offsets = [0, 0], sizes = [16, 32], strides = [1, 1]} : vector<16x66xf32> to vector<16x32xf32>
    %24 = vector.extract_strided_slice %21 {offsets = [0, 0], sizes = [16, 32], strides = [1, 1]} : vector<16x66xf32> to vector<16x32xf32>
    %25 = tpu.concatenate %22, %23, %24 in 1 : vector<16x32xf32>, vector<16x32xf32>, vector<16x32xf32> -> vector<16x96xf32>
    %26 = vector.extract_strided_slice %16 {offsets = [0, 32], sizes = [16, 32], strides = [1, 1]} : vector<16x66xf32> to vector<16x32xf32>
    %27 = vector.extract_strided_slice %17 {offsets = [0, 32], sizes = [16, 32], strides = [1, 1]} : vector<16x66xf32> to vector<16x32xf32>
    %28 = vector.extract_strided_slice %21 {offsets = [0, 32], sizes = [16, 32], strides = [1, 1]} : vector<16x66xf32> to vector<16x32xf32>
    %29 = tpu.concatenate %26, %27, %28 in 1 : vector<16x32xf32>, vector<16x32xf32>, vector<16x32xf32> -> vector<16x96xf32>
    %30 = tpu.concatenate %25, %29 in 0 : vector<16x96xf32>, vector<16x96xf32> -> vector<32x96xf32>
    %cst_11 = arith.constant dense<0.000000e+00> : vector<32x64xf32>
    %31 = tpu.matmul %30, %4, %cst_11 {dimension_numbers = #tpu.dot_dimension_numbers<[1], [0], [0], [1], [0, 0, 1, 1], [], []>} : vector<32x96xf32>, vector<96x64xf32>, vector<32x64xf32> -> vector<32x64xf32>
    %32 = vector.extract_strided_slice %16 {offsets = [0, 64], sizes = [16, 1], strides = [1, 1]} : vector<16x66xf32> to vector<16x1xf32>
    %33 = vector.extract_strided_slice %7 {offsets = [0, 0], sizes = [1, 64], strides = [1, 1]} : vector<3x64xf32> to vector<1x64xf32>
    %34 = vector.broadcast %32 : vector<16x1xf32> to vector<16x64xf32>
    %35 = vector.broadcast %33 : vector<1x64xf32> to vector<16x64xf32>
    %36 = arith.mulf %34, %35 : vector<16x64xf32>
    %37 = vector.extract_strided_slice %17 {offsets = [0, 64], sizes = [16, 1], strides = [1, 1]} : vector<16x66xf32> to vector<16x1xf32>
    %38 = vector.extract_strided_slice %7 {offsets = [1, 0], sizes = [1, 64], strides = [1, 1]} : vector<3x64xf32> to vector<1x64xf32>
    %39 = vector.broadcast %37 : vector<16x1xf32> to vector<16x64xf32>
    %40 = vector.broadcast %38 : vector<1x64xf32> to vector<16x64xf32>
    %41 = arith.mulf %39, %40 : vector<16x64xf32>
    %42 = arith.addf %36, %41 : vector<16x64xf32>
    %43 = vector.extract_strided_slice %21 {offsets = [0, 64], sizes = [16, 1], strides = [1, 1]} : vector<16x66xf32> to vector<16x1xf32>
    %44 = vector.extract_strided_slice %7 {offsets = [2, 0], sizes = [1, 64], strides = [1, 1]} : vector<3x64xf32> to vector<1x64xf32>
    %45 = vector.broadcast %43 : vector<16x1xf32> to vector<16x64xf32>
    %46 = vector.broadcast %44 : vector<1x64xf32> to vector<16x64xf32>
    %47 = arith.mulf %45, %46 : vector<16x64xf32>
    %48 = arith.addf %42, %47 : vector<16x64xf32>
    %49 = vector.extract_strided_slice %16 {offsets = [0, 65], sizes = [16, 1], strides = [1, 1]} : vector<16x66xf32> to vector<16x1xf32>
    %50 = vector.extract_strided_slice %7 {offsets = [0, 0], sizes = [1, 64], strides = [1, 1]} : vector<3x64xf32> to vector<1x64xf32>
    %51 = vector.broadcast %49 : vector<16x1xf32> to vector<16x64xf32>
    %52 = vector.broadcast %50 : vector<1x64xf32> to vector<16x64xf32>
    %53 = arith.mulf %51, %52 : vector<16x64xf32>
    %54 = vector.extract_strided_slice %17 {offsets = [0, 65], sizes = [16, 1], strides = [1, 1]} : vector<16x66xf32> to vector<16x1xf32>
    %55 = vector.extract_strided_slice %7 {offsets = [1, 0], sizes = [1, 64], strides = [1, 1]} : vector<3x64xf32> to vector<1x64xf32>
    %56 = vector.broadcast %54 : vector<16x1xf32> to vector<16x64xf32>
    %57 = vector.broadcast %55 : vector<1x64xf32> to vector<16x64xf32>
    %58 = arith.mulf %56, %57 : vector<16x64xf32>
    %59 = arith.addf %53, %58 : vector<16x64xf32>
    %60 = vector.extract_strided_slice %21 {offsets = [0, 65], sizes = [16, 1], strides = [1, 1]} : vector<16x66xf32> to vector<16x1xf32>
    %61 = vector.extract_strided_slice %7 {offsets = [2, 0], sizes = [1, 64], strides = [1, 1]} : vector<3x64xf32> to vector<1x64xf32>
    %62 = vector.broadcast %60 : vector<16x1xf32> to vector<16x64xf32>
    %63 = vector.broadcast %61 : vector<1x64xf32> to vector<16x64xf32>
    %64 = arith.mulf %62, %63 : vector<16x64xf32>
    %65 = arith.addf %59, %64 : vector<16x64xf32>
    %66 = tpu.concatenate %48, %65 in 0 : vector<16x64xf32>, vector<16x64xf32> -> vector<32x64xf32>
    %67 = arith.addf %31, %66 : vector<32x64xf32>
    %68 = vector.broadcast %8 : vector<1x64xf32> to vector<32x64xf32>
    %69 = arith.addf %67, %68 : vector<32x64xf32>
    %70 = arith.negf %69 : vector<32x64xf32>
    %71 = math.exp %70 : vector<32x64xf32>
    %cst_12 = arith.constant 1.000000e+00 : f32
    %72 = vector.broadcast %cst_12 : f32 to vector<32x64xf32>
    %73 = arith.addf %72, %71 : vector<32x64xf32>
    %74 = arith.divf %72, %73 : vector<32x64xf32>
    %75 = vector.extract_strided_slice %74 {offsets = [0, 0], sizes = [32, 32], strides = [1, 1]} : vector<32x64xf32> to vector<32x32xf32>
    %76 = vector.extract_strided_slice %74 {offsets = [0, 32], sizes = [32, 32], strides = [1, 1]} : vector<32x64xf32> to vector<32x32xf32>
    %77 = arith.mulf %75, %2 : vector<32x32xf32>
    %78 = vector.extract_strided_slice %77 {offsets = [0, 0], sizes = [16, 32], strides = [1, 1]} : vector<32x32xf32> to vector<16x32xf32>
    %79 = vector.extract_strided_slice %77 {offsets = [16, 0], sizes = [16, 32], strides = [1, 1]} : vector<32x32xf32> to vector<16x32xf32>
    %80 = tpu.concatenate %78, %79 in 1 : vector<16x32xf32>, vector<16x32xf32> -> vector<16x64xf32>
    %cst_13 = arith.constant dense<0.000000e+00> : vector<16x64xf32>
    %81 = tpu.matmul %0, %80, %cst_13 {dimension_numbers = #tpu.dot_dimension_numbers<[1], [0], [0], [1], [0, 0, 1, 1], [], []>} : vector<16x16xf32>, vector<16x64xf32>, vector<16x64xf32> -> vector<16x64xf32>
    %cst_14 = arith.constant dense<0.000000e+00> : vector<16x64xf32>
    %82 = tpu.matmul %0, %81, %cst_14 {dimension_numbers = #tpu.dot_dimension_numbers<[1], [0], [0], [1], [0, 0, 1, 1], [], []>} : vector<16x16xf32>, vector<16x64xf32>, vector<16x64xf32> -> vector<16x64xf32>
    %cst_15 = arith.constant 2.000000e+00 : f32
    %83 = vector.broadcast %cst_15 : f32 to vector<16x64xf32>
    %84 = arith.mulf %83, %82 : vector<16x64xf32>
    %85 = arith.subf %84, %80 : vector<16x64xf32>
    %86 = vector.extract_strided_slice %80 {offsets = [0, 0], sizes = [16, 32], strides = [1, 1]} : vector<16x64xf32> to vector<16x32xf32>
    %87 = vector.extract_strided_slice %81 {offsets = [0, 0], sizes = [16, 32], strides = [1, 1]} : vector<16x64xf32> to vector<16x32xf32>
    %88 = vector.extract_strided_slice %85 {offsets = [0, 0], sizes = [16, 32], strides = [1, 1]} : vector<16x64xf32> to vector<16x32xf32>
    %89 = tpu.concatenate %86, %87, %88 in 1 : vector<16x32xf32>, vector<16x32xf32>, vector<16x32xf32> -> vector<16x96xf32>
    %90 = vector.extract_strided_slice %80 {offsets = [0, 32], sizes = [16, 32], strides = [1, 1]} : vector<16x64xf32> to vector<16x32xf32>
    %91 = vector.extract_strided_slice %81 {offsets = [0, 32], sizes = [16, 32], strides = [1, 1]} : vector<16x64xf32> to vector<16x32xf32>
    %92 = vector.extract_strided_slice %85 {offsets = [0, 32], sizes = [16, 32], strides = [1, 1]} : vector<16x64xf32> to vector<16x32xf32>
    %93 = tpu.concatenate %90, %91, %92 in 1 : vector<16x32xf32>, vector<16x32xf32>, vector<16x32xf32> -> vector<16x96xf32>
    %94 = tpu.concatenate %89, %93 in 0 : vector<16x96xf32>, vector<16x96xf32> -> vector<32x96xf32>
    %cst_16 = arith.constant dense<0.000000e+00> : vector<32x32xf32>
    %95 = tpu.matmul %94, %5, %cst_16 {dimension_numbers = #tpu.dot_dimension_numbers<[1], [0], [0], [1], [0, 0, 1, 1], [], []>} : vector<32x96xf32>, vector<96x32xf32>, vector<32x32xf32> -> vector<32x32xf32>
    %96 = vector.extract_strided_slice %16 {offsets = [0, 64], sizes = [16, 1], strides = [1, 1]} : vector<16x66xf32> to vector<16x1xf32>
    %97 = vector.extract_strided_slice %9 {offsets = [0, 0], sizes = [1, 32], strides = [1, 1]} : vector<3x32xf32> to vector<1x32xf32>
    %98 = vector.broadcast %96 : vector<16x1xf32> to vector<16x32xf32>
    %99 = vector.broadcast %97 : vector<1x32xf32> to vector<16x32xf32>
    %100 = arith.mulf %98, %99 : vector<16x32xf32>
    %101 = vector.extract_strided_slice %17 {offsets = [0, 64], sizes = [16, 1], strides = [1, 1]} : vector<16x66xf32> to vector<16x1xf32>
    %102 = vector.extract_strided_slice %9 {offsets = [1, 0], sizes = [1, 32], strides = [1, 1]} : vector<3x32xf32> to vector<1x32xf32>
    %103 = vector.broadcast %101 : vector<16x1xf32> to vector<16x32xf32>
    %104 = vector.broadcast %102 : vector<1x32xf32> to vector<16x32xf32>
    %105 = arith.mulf %103, %104 : vector<16x32xf32>
    %106 = arith.addf %100, %105 : vector<16x32xf32>
    %107 = vector.extract_strided_slice %21 {offsets = [0, 64], sizes = [16, 1], strides = [1, 1]} : vector<16x66xf32> to vector<16x1xf32>
    %108 = vector.extract_strided_slice %9 {offsets = [2, 0], sizes = [1, 32], strides = [1, 1]} : vector<3x32xf32> to vector<1x32xf32>
    %109 = vector.broadcast %107 : vector<16x1xf32> to vector<16x32xf32>
    %110 = vector.broadcast %108 : vector<1x32xf32> to vector<16x32xf32>
    %111 = arith.mulf %109, %110 : vector<16x32xf32>
    %112 = arith.addf %106, %111 : vector<16x32xf32>
    %113 = vector.extract_strided_slice %16 {offsets = [0, 65], sizes = [16, 1], strides = [1, 1]} : vector<16x66xf32> to vector<16x1xf32>
    %114 = vector.extract_strided_slice %9 {offsets = [0, 0], sizes = [1, 32], strides = [1, 1]} : vector<3x32xf32> to vector<1x32xf32>
    %115 = vector.broadcast %113 : vector<16x1xf32> to vector<16x32xf32>
    %116 = vector.broadcast %114 : vector<1x32xf32> to vector<16x32xf32>
    %117 = arith.mulf %115, %116 : vector<16x32xf32>
    %118 = vector.extract_strided_slice %17 {offsets = [0, 65], sizes = [16, 1], strides = [1, 1]} : vector<16x66xf32> to vector<16x1xf32>
    %119 = vector.extract_strided_slice %9 {offsets = [1, 0], sizes = [1, 32], strides = [1, 1]} : vector<3x32xf32> to vector<1x32xf32>
    %120 = vector.broadcast %118 : vector<16x1xf32> to vector<16x32xf32>
    %121 = vector.broadcast %119 : vector<1x32xf32> to vector<16x32xf32>
    %122 = arith.mulf %120, %121 : vector<16x32xf32>
    %123 = arith.addf %117, %122 : vector<16x32xf32>
    %124 = vector.extract_strided_slice %21 {offsets = [0, 65], sizes = [16, 1], strides = [1, 1]} : vector<16x66xf32> to vector<16x1xf32>
    %125 = vector.extract_strided_slice %9 {offsets = [2, 0], sizes = [1, 32], strides = [1, 1]} : vector<3x32xf32> to vector<1x32xf32>
    %126 = vector.broadcast %124 : vector<16x1xf32> to vector<16x32xf32>
    %127 = vector.broadcast %125 : vector<1x32xf32> to vector<16x32xf32>
    %128 = arith.mulf %126, %127 : vector<16x32xf32>
    %129 = arith.addf %123, %128 : vector<16x32xf32>
    %130 = tpu.concatenate %112, %129 in 0 : vector<16x32xf32>, vector<16x32xf32> -> vector<32x32xf32>
    %131 = arith.addf %95, %130 : vector<32x32xf32>
    %132 = vector.broadcast %10 : vector<1x32xf32> to vector<32x32xf32>
    %133 = arith.addf %131, %132 : vector<32x32xf32>
    %134 = math.tanh %133 : vector<32x32xf32>
    %135 = arith.mulf %76, %2 : vector<32x32xf32>
    %cst_17 = arith.constant 1.000000e+00 : f32
    %136 = vector.broadcast %cst_17 : f32 to vector<32x32xf32>
    %137 = arith.subf %136, %76 : vector<32x32xf32>
    %138 = arith.mulf %137, %134 : vector<32x32xf32>
    %139 = arith.addf %135, %138 : vector<32x32xf32>
    %140 = vector.extract_strided_slice %139 {offsets = [0, 0], sizes = [16, 32], strides = [1, 1]} : vector<32x32xf32> to vector<16x32xf32>
    %141 = vector.extract_strided_slice %140 {offsets = [0, 0], sizes = [1, 32], strides = [1, 1]} : vector<16x32xf32> to vector<1x32xf32>
    %142 = vector.extract_strided_slice %140 {offsets = [1, 0], sizes = [1, 32], strides = [1, 1]} : vector<16x32xf32> to vector<1x32xf32>
    %143 = vector.extract_strided_slice %140 {offsets = [2, 0], sizes = [1, 32], strides = [1, 1]} : vector<16x32xf32> to vector<1x32xf32>
    %144 = vector.extract_strided_slice %140 {offsets = [3, 0], sizes = [1, 32], strides = [1, 1]} : vector<16x32xf32> to vector<1x32xf32>
    %145 = vector.extract_strided_slice %140 {offsets = [4, 0], sizes = [1, 32], strides = [1, 1]} : vector<16x32xf32> to vector<1x32xf32>
    %146 = vector.extract_strided_slice %140 {offsets = [5, 0], sizes = [1, 32], strides = [1, 1]} : vector<16x32xf32> to vector<1x32xf32>
    %147 = vector.extract_strided_slice %140 {offsets = [6, 0], sizes = [1, 32], strides = [1, 1]} : vector<16x32xf32> to vector<1x32xf32>
    %148 = vector.extract_strided_slice %140 {offsets = [7, 0], sizes = [1, 32], strides = [1, 1]} : vector<16x32xf32> to vector<1x32xf32>
    %149 = vector.extract_strided_slice %140 {offsets = [8, 0], sizes = [1, 32], strides = [1, 1]} : vector<16x32xf32> to vector<1x32xf32>
    %150 = vector.extract_strided_slice %140 {offsets = [9, 0], sizes = [1, 32], strides = [1, 1]} : vector<16x32xf32> to vector<1x32xf32>
    %151 = vector.extract_strided_slice %140 {offsets = [10, 0], sizes = [1, 32], strides = [1, 1]} : vector<16x32xf32> to vector<1x32xf32>
    %152 = vector.extract_strided_slice %140 {offsets = [11, 0], sizes = [1, 32], strides = [1, 1]} : vector<16x32xf32> to vector<1x32xf32>
    %153 = vector.extract_strided_slice %140 {offsets = [12, 0], sizes = [1, 32], strides = [1, 1]} : vector<16x32xf32> to vector<1x32xf32>
    %154 = vector.extract_strided_slice %140 {offsets = [13, 0], sizes = [1, 32], strides = [1, 1]} : vector<16x32xf32> to vector<1x32xf32>
    %155 = vector.extract_strided_slice %140 {offsets = [14, 0], sizes = [1, 32], strides = [1, 1]} : vector<16x32xf32> to vector<1x32xf32>
    %156 = vector.extract_strided_slice %140 {offsets = [15, 0], sizes = [1, 32], strides = [1, 1]} : vector<16x32xf32> to vector<1x32xf32>
    %157 = tpu.concatenate %141, %142, %143, %144, %145, %146, %147, %148, %149, %150, %151, %152, %153, %154, %155, %156 in 1 : vector<1x32xf32>, vector<1x32xf32>, vector<1x32xf32>, vector<1x32xf32>, vector<1x32xf32>, vector<1x32xf32>, vector<1x32xf32>, vector<1x32xf32>, vector<1x32xf32>, vector<1x32xf32>, vector<1x32xf32>, vector<1x32xf32>, vector<1x32xf32>, vector<1x32xf32>, vector<1x32xf32>, vector<1x32xf32> -> vector<1x512xf32>
    %158 = vector.extract_strided_slice %139 {offsets = [16, 0], sizes = [16, 32], strides = [1, 1]} : vector<32x32xf32> to vector<16x32xf32>
    %159 = vector.extract_strided_slice %158 {offsets = [0, 0], sizes = [1, 32], strides = [1, 1]} : vector<16x32xf32> to vector<1x32xf32>
    %160 = vector.extract_strided_slice %158 {offsets = [1, 0], sizes = [1, 32], strides = [1, 1]} : vector<16x32xf32> to vector<1x32xf32>
    %161 = vector.extract_strided_slice %158 {offsets = [2, 0], sizes = [1, 32], strides = [1, 1]} : vector<16x32xf32> to vector<1x32xf32>
    %162 = vector.extract_strided_slice %158 {offsets = [3, 0], sizes = [1, 32], strides = [1, 1]} : vector<16x32xf32> to vector<1x32xf32>
    %163 = vector.extract_strided_slice %158 {offsets = [4, 0], sizes = [1, 32], strides = [1, 1]} : vector<16x32xf32> to vector<1x32xf32>
    %164 = vector.extract_strided_slice %158 {offsets = [5, 0], sizes = [1, 32], strides = [1, 1]} : vector<16x32xf32> to vector<1x32xf32>
    %165 = vector.extract_strided_slice %158 {offsets = [6, 0], sizes = [1, 32], strides = [1, 1]} : vector<16x32xf32> to vector<1x32xf32>
    %166 = vector.extract_strided_slice %158 {offsets = [7, 0], sizes = [1, 32], strides = [1, 1]} : vector<16x32xf32> to vector<1x32xf32>
    %167 = vector.extract_strided_slice %158 {offsets = [8, 0], sizes = [1, 32], strides = [1, 1]} : vector<16x32xf32> to vector<1x32xf32>
    %168 = vector.extract_strided_slice %158 {offsets = [9, 0], sizes = [1, 32], strides = [1, 1]} : vector<16x32xf32> to vector<1x32xf32>
    %169 = vector.extract_strided_slice %158 {offsets = [10, 0], sizes = [1, 32], strides = [1, 1]} : vector<16x32xf32> to vector<1x32xf32>
    %170 = vector.extract_strided_slice %158 {offsets = [11, 0], sizes = [1, 32], strides = [1, 1]} : vector<16x32xf32> to vector<1x32xf32>
    %171 = vector.extract_strided_slice %158 {offsets = [12, 0], sizes = [1, 32], strides = [1, 1]} : vector<16x32xf32> to vector<1x32xf32>
    %172 = vector.extract_strided_slice %158 {offsets = [13, 0], sizes = [1, 32], strides = [1, 1]} : vector<16x32xf32> to vector<1x32xf32>
    %173 = vector.extract_strided_slice %158 {offsets = [14, 0], sizes = [1, 32], strides = [1, 1]} : vector<16x32xf32> to vector<1x32xf32>
    %174 = vector.extract_strided_slice %158 {offsets = [15, 0], sizes = [1, 32], strides = [1, 1]} : vector<16x32xf32> to vector<1x32xf32>
    %175 = tpu.concatenate %159, %160, %161, %162, %163, %164, %165, %166, %167, %168, %169, %170, %171, %172, %173, %174 in 1 : vector<1x32xf32>, vector<1x32xf32>, vector<1x32xf32>, vector<1x32xf32>, vector<1x32xf32>, vector<1x32xf32>, vector<1x32xf32>, vector<1x32xf32>, vector<1x32xf32>, vector<1x32xf32>, vector<1x32xf32>, vector<1x32xf32>, vector<1x32xf32>, vector<1x32xf32>, vector<1x32xf32>, vector<1x32xf32> -> vector<1x512xf32>
    %176 = tpu.concatenate %157, %175 in 0 : vector<1x512xf32>, vector<1x512xf32> -> vector<2x512xf32>
    %c0_18 = arith.constant 0 : index
    %c0_19 = arith.constant 0 : index
    %177 = vector.load %arg6[%c0_18, %c0_19] : memref<2x512xf32, #tpu.memory_space<vmem>>, vector<2x512xf32>
    tpu.vector_store %arg6[%c0_18, %c0_19], %176 {strides = array<i32>} : memref<2x512xf32, #tpu.memory_space<vmem>>, vector<2x512xf32>,
    %178 = vector.broadcast %11 : vector<1x32xf32> to vector<32x32xf32>
    %179 = arith.mulf %139, %178 : vector<32x32xf32>
    %cst_20 = arith.constant dense<0.000000e+00> : vector<32xf32>
    %180 = vector.multi_reduction <add>, %179, %cst_20 [1] : vector<32x32xf32> to vector<32xf32>
    %181 = vector.shape_cast %180 : vector<32xf32> to vector<32x1xf32>
    %182 = vector.broadcast %12 : vector<1x1xf32> to vector<32x1xf32>
    %183 = arith.addf %181, %182 : vector<32x1xf32>
    %c0_21 = arith.constant 0 : index
    %c0_22 = arith.constant 0 : index
    %184 = vector.load %arg7[%c0_21, %c0_22] : memref<32x1xf32, #tpu.memory_space<vmem>>, vector<32x1xf32>
    tpu.vector_store %arg7[%c0_21, %c0_22], %183 {strides = array<i32>} : memref<32x1xf32, #tpu.memory_space<vmem>>, vector<32x1xf32>,
    return
  }
  func.func @transform_0(%arg0: i32) -> (i32, i32) {
    %c0_i32 = arith.constant 0 : i32
    %c0_i32_0 = arith.constant 0 : i32
    %c0_i32_1 = arith.constant 0 : i32
    return %c0_i32, %c0_i32_0 : i32, i32
  }
  func.func @transform_1(%arg0: i32) -> (i32, i32) {
    %c0_i32 = arith.constant 0 : i32
    %c0_i32_0 = arith.constant 0 : i32
    %c0_i32_1 = arith.constant 0 : i32
    return %c0_i32, %c0_i32_0 : i32, i32
  }
  func.func @transform_2(%arg0: i32) -> (i32, i32) {
    %c0_i32 = arith.constant 0 : i32
    %c0_i32_0 = arith.constant 0 : i32
    %c0_i32_1 = arith.constant 0 : i32
    return %c0_i32, %c0_i32_0 : i32, i32
  }
  func.func @transform_3(%arg0: i32) -> (i32, i32) {
    %c0_i32 = arith.constant 0 : i32
    %c0_i32_0 = arith.constant 0 : i32
    %c0_i32_1 = arith.constant 0 : i32
    return %c0_i32, %c0_i32_0 : i32, i32
  }
  func.func @transform_4(%arg0: i32) -> (i32, i32) {
    %c0_i32 = arith.constant 0 : i32
    %c0_i32_0 = arith.constant 0 : i32
    %c0_i32_1 = arith.constant 0 : i32
    return %c0_i32, %c0_i32_0 : i32, i32
  }
  func.func @transform_5(%arg0: i32) -> (i32, i32) {
    %c0_i32 = arith.constant 0 : i32
    %c0_i32_0 = arith.constant 0 : i32
    %c0_i32_1 = arith.constant 0 : i32
    return %c0_i32, %c0_i32_0 : i32, i32
  }
  func.func @transform_6(%arg0: i32) -> (i32, i32) {
    %c0_i32 = arith.constant 0 : i32
    %c0_i32_0 = arith.constant 0 : i32
    %c0_i32_1 = arith.constant 0 : i32
    return %c0_i32, %c0_i32_0 : i32, i32
  }
}

</mosaic_0001>

<llo_original>
// kernel: squeeze.1
$region0: #{squeeze.1}
  %s0 = inlined_call_operand.vmem [shape: f32[1,2,512], index: 0, kind: input, shape index: {}]
  %s1 = inlined_call_operand.vmem [shape: f32[32,32], index: 1, kind: output, shape index: {}]
  $region1: #{squeeze.1} parent=0
    #allocation0 [shape = 'u8[16384]{0}', space=vmem, size = 0x4000, scoped, tag = 'scoped mem for input reshape']
    %s3 = sshll.u32 1, 2
    %s4 = ssub.s32 %s3, 1
    %s5 = smul.addr 2, 3
    %s6 = scalar_lea.vmem %s0, %s5
    %v7 = vld [vmem:[%s6] sm:%s4]
    %s8 = scalar_lea.vmem [#allocation0], 24
    %9 = vst [vmem:[%s8] sm:%s4] %v7
    %s10 = smul.addr 2, 2
    %s11 = scalar_lea.vmem %s0, %s10
    %v12 = vld [vmem:[%s11] sm:%s4]
    %s13 = scalar_lea.vmem [#allocation0], 16
    %14 = vst [vmem:[%s13] sm:%s4] %v12
    %s15 = scalar_lea.vmem %s0, 2
    %v16 = vld [vmem:[%s15] sm:%s4]
    %s17 = scalar_lea.vmem [#allocation0], 8
    %18 = vst [vmem:[%s17] sm:%s4] %v16
    %v19 = vld [vmem:[%s0] sm:%s4]
    %20 = vst [vmem:[#allocation0] sm:%s4] %v19
    %v21 = vld [vmem:[#allocation0] sm:$0x3]
    %vm22 = vcmask 261120
    %23 = vst.msk [vmem:[%s1] ss:$16 sm:$0x3] %vm22, %v21
    %s24 = scalar_lea.vmem [#allocation0], 8
    %v25 = vld [vmem:[%s24] sm:$0x3]
    %vm26 = vcmask 261120
    %s27 = scalar_lea.vmem %s1, 4
    %28 = vst.msk [vmem:[%s27] ss:$16 sm:$0x3] %vm26, %v25
    %s29 = scalar_lea.vmem [#allocation0], 16
    %v30 = vld [vmem:[%s29] sm:$0x3]
    %vm31 = vcmask 261120
    %s32 = scalar_lea.vmem %s1, 8
    %33 = vst.msk [vmem:[%s32] ss:$16 sm:$0x3] %vm31, %v30
    %s34 = scalar_lea.vmem [#allocation0], 24
    %v35 = vld [vmem:[%s34] sm:$0x3]
    %vm36 = vcmask 261120
    %s37 = scalar_lea.vmem %s1, 12
    %38 = vst.msk [vmem:[%s37] ss:$16 sm:$0x3] %vm36, %v35
    %v39 = vld [vmem:[#allocation0] ss:$8 sm:$0xf]
    %s40 = scalar_lea.vmem [#allocation0], 4294967265
    %v41 = vld [vmem:[%s40] ss:$8 sm:$0xf0]
    %vm42 = vcmask 1047556
    %v43 = vsel %vm42, %v41, %v39
    %44 = vrot.lane.b32.xlu0 %v43, 96
    %v45 = vpop.permute.xlu0 %44
    %vm46 = vcmask 261120
    %s47 = scalar_lea.vmem %s1, 1
    %48 = vst.msk [vmem:[%s47] ss:$4 sm:$0xff] %vm46, %v45
    %v49 = vld [vmem:[#allocation0] ss:$8 sm:$0xf]
    %s50 = scalar_lea.vmem [#allocation0], 4294967265
    %v51 = vld [vmem:[%s50] ss:$8 sm:$0xf0]
    %vm52 = vcmask 1047556
    %v53 = vsel %vm52, %v51, %v49
    %54 = vrot.lane.b32.xlu0 %v53, 64
    %v55 = vpop.permute.xlu0 %54
    %vm56 = vcmask 261120
    %s57 = scalar_lea.vmem %s1, 2
    %58 = vst.msk [vmem:[%s57] ss:$4 sm:$0xff] %vm56, %v55
    %v59 = vld [vmem:[#allocation0] ss:$8 sm:$0xf]
    %s60 = scalar_lea.vmem [#allocation0], 4294967265
    %v61 = vld [vmem:[%s60] ss:$8 sm:$0xf0]
    %vm62 = vcmask 1047556
    %v63 = vsel %vm62, %v61, %v59
    %64 = vrot.lane.b32.xlu0 %v63, 32
    %v65 = vpop.permute.xlu0 %64
    %vm66 = vcmask 261120
    %s67 = scalar_lea.vmem %s1, 3
    %68 = vst.msk [vmem:[%s67] ss:$4 sm:$0xff] %vm66, %v65

// kernel: decoder_forward.1
$region0: #{decoder_forward.1}
  #allocation0 [shape = 'u32[]', space=smem, size = 0x4, offset = 0x4, fixed_abs, tag = 'smem constant byte address 0x4 - core index']
  #allocation1 [shape = 'u32[144,128]{1,0:T(1,128)}', space=vmem, size = 0x12000, scoped, tag = 'internal scratch']
  %s0 = inlined_call_operand.vmem [shape: f32[16,2], index: 0, kind: input, shape index: {}]
  %s1 = inlined_call_operand.vmem [shape: f32[32,32], index: 1, kind: input, shape index: {}]
  %s2 = inlined_call_operand.vmem [shape: f32[16,16], index: 2, kind: input, shape index: {}]
  %s3 = inlined_call_operand.hbm [shape: f32[96,96], index: 3, kind: input, shape index: {}]
  %s4 = inlined_call_operand.vmem [shape: f32[10,64], index: 4, kind: input, shape index: {}]
  %s5 = inlined_call_operand.hbm [shape: f32[2,512], index: 5, kind: output, shape index: {0}]
  %s6 = inlined_call_operand.vmem [shape: f32[32,1], index: 6, kind: output, shape index: {1}]
  %7 = xla_tuple %s5, %s6
  %s8 = sld [smem:[#allocation0]]
  $region42: #{decoder_forward.1} parent=0
    _
  %s10 = ssub.s32 1, %s8
  %s11 = scalar_select 0, %s10, %s8
  $region1: #{decoder_forward.1} parent=0
    #allocation2 [shape = 'u8[49152]{0}', space=vmem, size = 0xc000, scoped, tag = 'input window, operand 3, single buffered']
    #allocation3 [shape = 's32[1]{0}', space=sflag, size = 0x4, scoped, tag = 'scoped memory for decoder_forward.1']
    #allocation4 [shape = 's32[1]{0}', space=sflag, size = 0x4, scoped, tag = 'scoped memory for decoder_forward.1']
    #allocation5 [shape = 'u8[4096]{0}', space=vmem, size = 0x1000, scoped, tag = 'output window, operand 0, single buffered']
    %12 = vsyncpa [#allocation3], 0
    %13 = vsyncpa [#allocation4], 0
    // Predicated region
    $region2: #{decoder_forward.1} parent=1 // pred_check
      _
    $region3: #{decoder_forward.1} parent=1 // pred_check_branch
      %15 = sbr.rel (0) target = $region5
    $region4: #{decoder_forward.1} parent=1 // pred_region
      _
    $region5: #{decoder_forward.1} parent=1 // pred_fallthru
      _
    // Predicated region
    $region6: #{decoder_forward.1} parent=1 // pred_check
      _
    $region7: #{decoder_forward.1} parent=1 // pred_check_branch
      %17 = sbr.rel (0) target = $region9
    $region8: #{decoder_forward.1} parent=1 // pred_region
      _
    $region9: #{decoder_forward.1} parent=1 // pred_fallthru
      _
    // Predicated region
    $region10: #{decoder_forward.1} parent=1 // pred_check
      _
    $region11: #{decoder_forward.1} parent=1 // pred_check_branch
      %19 = sbr.rel (0) target = $region13
    $region12: #{decoder_forward.1} parent=1 // pred_region
      _
    $region13: #{decoder_forward.1} parent=1 // pred_fallthru
      _
    // Predicated region
    $region14: #{decoder_forward.1} parent=1 // pred_check
      _
    $region15: #{decoder_forward.1} parent=1 // pred_check_branch
      %21 = sbr.rel (0) target = $region17
    $region16: #{decoder_forward.1} parent=1 // pred_region
      %s23 = ssub.s32 1536, 1536
      %24 = vsyncadd [#allocation3], %s23
      %s25 = sshll.u32 [#allocation2], 4
      %s26 = int_to_ptr.vmem [resolvable:$true] %s25
      %31 = dma.hbm_to_vmem [thread:$0]  %s3, 1536, %s26, [#allocation3], 128, 128, 8
    $region17: #{decoder_forward.1} parent=1 // pred_fallthru
      _
    // Predicated region
    $region18: #{decoder_forward.1} parent=1 // pred_check
      _
    $region19: #{decoder_forward.1} parent=1 // pred_check_branch
      %33 = sbr.rel (0) target = $region21
    $region20: #{decoder_forward.1} parent=1 // pred_region
      _
    $region21: #{decoder_forward.1} parent=1 // pred_fallthru
      _
    // Predicated region
    $region22: #{decoder_forward.1} parent=1 // pred_check
      _
    $region23: #{decoder_forward.1} parent=1 // pred_check_branch
      %35 = sbr.rel (0) target = $region25
    $region24: #{decoder_forward.1} parent=1 // pred_region
      %36 = dma.done [#allocation3], 1536
    $region25: #{decoder_forward.1} parent=1 // pred_fallthru
      _
    %v37 = vld [vmem:[%s2] sm:$0xff]
    %v38 = vld [vmem:[%s2 + $0x8] sm:$0xff]
    %v39 = vld [vmem:[%s0] sm:$0xff]
    %v40 = vld [vmem:[%s0 + $0x8] sm:$0xff]
    %v41 = vld [vmem:[%s1] sm:$0xff]
    %v42 = vld [vmem:[%s1 + $0x8] sm:$0xff]
    %v43 = vld [vmem:[%s1 + $0x10] sm:$0xff]
    %v44 = vld [vmem:[%s1 + $0x18] sm:$0xff]
    %v45 = vld [vmem:[#allocation2] sm:$0xff]
    %v46 = vld [vmem:[#allocation2 + $0x8] sm:$0xff]
    %v47 = vld [vmem:[#allocation2 + $0x10] sm:$0xff]
    %v48 = vld [vmem:[#allocation2 + $0x18] sm:$0xff]
    %v49 = vld [vmem:[#allocation2 + $0x20] sm:$0xff]
    %v50 = vld [vmem:[#allocation2 + $0x28] sm:$0xff]
    %v51 = vld [vmem:[#allocation2 + $0x30] sm:$0xff]
    %v52 = vld [vmem:[#allocation2 + $0x38] sm:$0xff]
    %v53 = vld [vmem:[#allocation2 + $0x40] sm:$0xff]
    %v54 = vld [vmem:[#allocation2 + $0x48] sm:$0xff]
    %v55 = vld [vmem:[#allocation2 + $0x50] sm:$0xff]
    %v56 = vld [vmem:[#allocation2 + $0x58] sm:$0xff]
    %v57 = vld [vmem:[%s4] sm:$0xff]
    %v58 = vld [vmem:[%s4 + $0x8] sm:$0x3]
    %61 = vrot.lane.b32.xlu0 %v43, 32
    %v62 = vpop.permute.xlu0 %61
    %63 = vrot.lane.b32.xlu0 %v44, 32
    %v64 = vpop.permute.xlu0 %63
    %vm67 = vcmask 261120
    %v68 = vsel %vm67, %v41, %v62
    %v69 = vsel %vm67, %v42, %v64
    %72 = vrot.lane.b32.xlu0 %v39, 64
    %v73 = vpop.permute.xlu0 %72
    %74 = vrot.lane.b32.xlu0 %v40, 64
    %v75 = vpop.permute.xlu0 %74
    %vm78 = vcmask 523264
    %v79 = vsel %vm78, %v68, %v73
    %v80 = vsel %vm78, %v69, %v75
    %vm81 = vcmask 130048
    %v83 = vsel %vm81, %v37, 0
    %v86 = vsel %vm81, %v38, 0
    %88 = vmatprep.subr.mxu0 0.0
    %89 = vmatpush1.msra.mxu0 0.0
    %90 = vmatprep.subr.mxu0 0.0
    %91 = vmatpush1.msra.mxu0 0.0
    %92 = vmatprep.subr.mxu0 0.0
    %93 = vmatpush1.msra.mxu0 0.0
    %94 = vmatprep.subr.mxu0 0.0
    %95 = vmatpush1.msra.mxu0 0.0
    %96 = vmatprep.subr.mxu0 0.0
    %97 = vmatpush1.msra.mxu0 0.0
    %98 = vmatprep.subr.mxu0 0.0
    %99 = vmatpush1.msra.mxu0 0.0
    %100 = vmatprep.subr.mxu0 0.0
    %101 = vmatpush1.msra.mxu0 0.0
    %102 = vmatprep.subr.mxu0 0.0
    %103 = vmatpush1.msra.mxu0 0.0
    %104 = vmatprep.subr.mxu0 0.0
    %105 = vmatpush1.msra.mxu0 0.0
    %106 = vmatprep.subr.mxu0 0.0
    %107 = vmatpush1.msra.mxu0 0.0
    %108 = vmatprep.subr.mxu0 0.0
    %109 = vmatpush1.msra.mxu0 0.0
    %110 = vmatprep.subr.mxu0 0.0
    %111 = vmatpush1.msra.mxu0 0.0
    %112 = vmatprep.subr.mxu0 0.0
    %113 = vmatpush1.msra.mxu0 0.0
    %114 = vmatprep.subr.mxu0 0.0
    %115 = vmatpush1.msra.mxu0 0.0
    %116 = vmatprep.subr.mxu0 0.0
    %117 = vmatpush1.msra.mxu0 %v80
    %118 = vmatprep.subr.mxu0 0.0
    %119 = vmatpush1.msra.mxu0 %v79
    %120 = vmatprep.subr.mxu0 0.0
    %121 = vmatpush2.msra.mxu0 0.0
    %122 = vmatprep.subr.mxu0 0.0
    %123 = vmatpush2.msra.mxu0 0.0
    %124 = vmatprep.subr.mxu0 0.0
    %125 = vmatpush2.msra.mxu0 0.0
    %126 = vmatprep.subr.mxu0 0.0
    %127 = vmatpush2.msra.mxu0 0.0
    %128 = vmatprep.subr.mxu0 0.0
    %129 = vmatpush2.msra.mxu0 0.0
    %130 = vmatprep.subr.mxu0 0.0
    %131 = vmatpush2.msra.mxu0 0.0
    %132 = vmatprep.subr.mxu0 0.0
    %133 = vmatpush2.msra.mxu0 0.0
    %134 = vmatprep.subr.mxu0 0.0
    %135 = vmatpush2.msra.mxu0 0.0
    %136 = vmatprep.subr.mxu0 0.0
    %137 = vmatpush2.msra.mxu0 0.0
    %138 = vmatprep.subr.mxu0 0.0
    %139 = vmatpush2.msra.mxu0 0.0
    %140 = vmatprep.subr.mxu0 0.0
    %141 = vmatpush2.msra.mxu0 0.0
    %142 = vmatprep.subr.mxu0 0.0
    %143 = vmatpush2.msra.mxu0 0.0
    %144 = vmatprep.subr.mxu0 0.0
    %145 = vmatpush2.msra.mxu0 0.0
    %146 = vmatprep.subr.mxu0 0.0
    %147 = vmatpush2.msra.mxu0 0.0
    %148 = vmatprep.subr.mxu0 0.0
    %149 = vmatpush2.msra.mxu0 0.0
    %150 = vmatprep.subr.mxu0 0.0
    %151 = vmatpush2.msra.mxu0 0.0
    %152 = vmatprep.mubr.f32.mxu0 0.0
    %153 = vmatmul.mubr.f32.gmra.mxu0 %v83
    %v154 = vpop.f32.mrf.mxu0
    %v155 = vadd.f32 0.0, %v154
    %v156 = vpop.f32.mrf.mxu0
    %157 = vmatprep.mubr.f32.mxu0 0.0
    %158 = vmatmul.mubr.f32.gmra.mxu0 %v86
    %v159 = vpop.f32.mrf.mxu0
    %v160 = vadd.f32 0.0, %v159
    %v161 = vpop.f32.mrf.mxu0
    %162 = vdwg.mxu0
    %163 = vmatprep.subr.mxu0 0.0
    %164 = vmatpush1.msra.mxu0 0.0
    %165 = vmatprep.subr.mxu0 0.0
    %166 = vmatpush1.msra.mxu0 0.0
    %167 = vmatprep.subr.mxu0 0.0
    %168 = vmatpush1.msra.mxu0 0.0
    %169 = vmatprep.subr.mxu0 0.0
    %170 = vmatpush1.msra.mxu0 0.0
    %171 = vmatprep.subr.mxu0 0.0
    %172 = vmatpush1.msra.mxu0 0.0
    %173 = vmatprep.subr.mxu0 0.0
    %174 = vmatpush1.msra.mxu0 0.0
    %175 = vmatprep.subr.mxu0 0.0
    %176 = vmatpush1.msra.mxu0 0.0
    %177 = vmatprep.subr.mxu0 0.0
    %178 = vmatpush1.msra.mxu0 0.0
    %179 = vmatprep.subr.mxu0 0.0
    %180 = vmatpush1.msra.mxu0 0.0
    %181 = vmatprep.subr.mxu0 0.0
    %182 = vmatpush1.msra.mxu0 0.0
    %183 = vmatprep.subr.mxu0 0.0
    %184 = vmatpush1.msra.mxu0 0.0
    %185 = vmatprep.subr.mxu0 0.0
    %186 = vmatpush1.msra.mxu0 0.0
    %187 = vmatprep.subr.mxu0 0.0
    %188 = vmatpush1.msra.mxu0 0.0
    %189 = vmatprep.subr.mxu0 0.0
    %190 = vmatpush1.msra.mxu0 0.0
    %191 = vmatprep.subr.mxu0 0.0
    %192 = vmatpush1.msra.mxu0 %v160
    %193 = vmatprep.subr.mxu0 0.0
    %194 = vmatpush1.msra.mxu0 %v155
    %195 = vmatprep.subr.mxu0 0.0
    %196 = vmatpush2.msra.mxu0 0.0
    %197 = vmatprep.subr.mxu0 0.0
    %198 = vmatpush2.msra.mxu0 0.0
    %199 = vmatprep.subr.mxu0 0.0
    %200 = vmatpush2.msra.mxu0 0.0
    %201 = vmatprep.subr.mxu0 0.0
    %202 = vmatpush2.msra.mxu0 0.0
    %203 = vmatprep.subr.mxu0 0.0
    %204 = vmatpush2.msra.mxu0 0.0
    %205 = vmatprep.subr.mxu0 0.0
    %206 = vmatpush2.msra.mxu0 0.0
    %207 = vmatprep.subr.mxu0 0.0
    %208 = vmatpush2.msra.mxu0 0.0
    %209 = vmatprep.subr.mxu0 0.0
    %210 = vmatpush2.msra.mxu0 0.0
    %211 = vmatprep.subr.mxu0 0.0
    %212 = vmatpush2.msra.mxu0 0.0
    %213 = vmatprep.subr.mxu0 0.0
    %214 = vmatpush2.msra.mxu0 0.0
    %215 = vmatprep.subr.mxu0 0.0
    %216 = vmatpush2.msra.mxu0 0.0
    %217 = vmatprep.subr.mxu0 0.0
    %218 = vmatpush2.msra.mxu0 0.0
    %219 = vmatprep.subr.mxu0 0.0
    %220 = vmatpush2.msra.mxu0 0.0
    %221 = vmatprep.subr.mxu0 0.0
    %222 = vmatpush2.msra.mxu0 0.0
    %223 = vmatprep.subr.mxu0 0.0
    %224 = vmatpush2.msra.mxu0 0.0
    %225 = vmatprep.subr.mxu0 0.0
    %226 = vmatpush2.msra.mxu0 0.0
    %227 = vmatprep.mubr.f32.mxu0 0.0
    %228 = vmatmul.mubr.f32.gmra.mxu0 %v83
    %v229 = vpop.f32.mrf.mxu0
    %v230 = vadd.f32 0.0, %v229
    %v231 = vpop.f32.mrf.mxu0
    %232 = vmatprep.mubr.f32.mxu0 0.0
    %233 = vmatmul.mubr.f32.gmra.mxu0 %v86
    %v234 = vpop.f32.mrf.mxu0
    %v235 = vadd.f32 0.0, %v234
    %v236 = vpop.f32.mrf.mxu0
    %237 = vdwg.mxu0
    %v238 = vmul.f32 %v230, 2.0
    %v239 = vmul.f32 %v235, 2.0
    %v240 = vsub.f32 %v238, %v79
    %v241 = vsub.f32 %v239, %v80
    %244 = vrot.lane.b32.xlu0 %v155, 32
    %v245 = vpop.permute.xlu0 %244
    %246 = vrot.lane.b32.xlu0 %v160, 32
    %v247 = vpop.permute.xlu0 %246
    %252 = vrot.lane.b32.xlu0 %v240, 64
    %v253 = vpop.permute.xlu0 %252
    %254 = vrot.lane.b32.xlu0 %v241, 64
    %v255 = vpop.permute.xlu0 %254
    %v258 = vsel %vm67, %v79, %v245
    %v259 = vsel %vm67, %v80, %v247
    %v260 = vsel %vm78, %v258, %v253
    %v261 = vsel %vm78, %v259, %v255
    %264 = vrot.lane.b32.xlu0 %v79, 96
    %v265 = vpop.permute.xlu0 %264
    %266 = vrot.lane.b32.xlu0 %v80, 96
    %v267 = vpop.permute.xlu0 %266
    %270 = vrot.lane.b32.xlu0 %v240, 32
    %v271 = vpop.permute.xlu0 %270
    %272 = vrot.lane.b32.xlu0 %v241, 32
    %v273 = vpop.permute.xlu0 %272
    %v276 = vsel %vm67, %v265, %v155
    %v277 = vsel %vm67, %v267, %v160
    %v278 = vsel %vm78, %v276, %v271
    %v279 = vsel %vm78, %v277, %v273
    %280 = vset.pattern.permute.xlu0 64
    %281 = vperm.xlu0 %280, %v79
    %v282 = vpop.permute.xlu0 %281
    %284 = vset.pattern.permute.xlu0 64
    %285 = vperm.xlu0 %284, %v80
    %v286 = vpop.permute.xlu0 %285
    %v288 = vlaneseq
    %v289 = vshrl.u32 %v288, 7
    %v290 = vsub.s32 0, %v289
    %v291 = vrot.slane %v57, %v290
    %v292 = vmul.f32 %v282, %v291
    %v293 = vmul.f32 %v286, %v291
    %294 = vset.pattern.permute.xlu0 64
    %295 = vperm.xlu0 %294, %v155
    %v296 = vpop.permute.xlu0 %295
    %298 = vset.pattern.permute.xlu0 64
    %299 = vperm.xlu0 %298, %v160
    %v300 = vpop.permute.xlu0 %299
    %v302 = vlaneseq
    %v303 = vshrl.u32 %v302, 7
    %v304 = vsub.s32 1, %v303
    %v305 = vrot.slane %v57, %v304
    %v306 = vmul.f32 %v296, %v305
    %v307 = vmul.f32 %v300, %v305
    %v308 = vadd.f32 %v292, %v306
    %v309 = vadd.f32 %v293, %v307
    %310 = vset.pattern.permute.xlu0 64
    %311 = vperm.xlu0 %310, %v240
    %v312 = vpop.permute.xlu0 %311
    %314 = vset.pattern.permute.xlu0 64
    %315 = vperm.xlu0 %314, %v241
    %v316 = vpop.permute.xlu0 %315
    %v318 = vlaneseq
    %v319 = vshrl.u32 %v318, 7
    %v320 = vsub.s32 2, %v319
    %v321 = vrot.slane %v57, %v320
    %v322 = vmul.f32 %v312, %v321
    %v323 = vmul.f32 %v316, %v321
    %v324 = vadd.f32 %v308, %v322
    %v325 = vadd.f32 %v309, %v323
    %326 = vset.pattern.permute.xlu0 65
    %327 = vperm.xlu0 %326, %v79
    %v328 = vpop.permute.xlu0 %327
    %330 = vset.pattern.permute.xlu0 65
    %331 = vperm.xlu0 %330, %v80
    %v332 = vpop.permute.xlu0 %331
    %v334 = vmul.f32 %v328, %v291
    %v335 = vmul.f32 %v332, %v291
    %336 = vset.pattern.permute.xlu0 65
    %337 = vperm.xlu0 %336, %v155
    %v338 = vpop.permute.xlu0 %337
    %340 = vset.pattern.permute.xlu0 65
    %341 = vperm.xlu0 %340, %v160
    %v342 = vpop.permute.xlu0 %341
    %v344 = vmul.f32 %v338, %v305
    %v345 = vmul.f32 %v342, %v305
    %v346 = vadd.f32 %v334, %v344
    %v347 = vadd.f32 %v335, %v345
    %348 = vset.pattern.permute.xlu0 65
    %349 = vperm.xlu0 %348, %v240
    %v350 = vpop.permute.xlu0 %349
    %352 = vset.pattern.permute.xlu0 65
    %353 = vperm.xlu0 %352, %v241
    %v354 = vpop.permute.xlu0 %353
    %v356 = vmul.f32 %v350, %v321
    %v357 = vmul.f32 %v354, %v321
    %v358 = vadd.f32 %v346, %v356
    %v359 = vadd.f32 %v347, %v357
    %vm360 = vcmask 785408
    %v362 = vsel %vm360, %v260, 0
    %v365 = vsel %vm360, %v261, 0
    %v368 = vsel %vm360, %v278, 0
    %v371 = vsel %vm360, %v279, 0
    %373 = vmatprep.subr.mxu0 0.0
    %374 = vmatpush1.msra.mxu0 0.0
    %375 = vmatprep.subr.mxu0 0.0
    %376 = vmatpush1.msra.mxu0 0.0
    %377 = vmatprep.subr.mxu0 0.0
    %378 = vmatpush1.msra.mxu0 0.0
    %379 = vmatprep.subr.mxu0 0.0
    %380 = vmatpush1.msra.mxu0 0.0
    %381 = vmatprep.subr.mxu0 0.0
    %382 = vmatpush1.msra.mxu0 %v56
    %383 = vmatprep.subr.mxu0 0.0
    %384 = vmatpush1.msra.mxu0 %v55
    %385 = vmatprep.subr.mxu0 0.0
    %386 = vmatpush1.msra.mxu0 %v54
    %387 = vmatprep.subr.mxu0 0.0
    %388 = vmatpush1.msra.mxu0 %v53
    %389 = vmatprep.subr.mxu0 0.0
    %390 = vmatpush1.msra.mxu0 %v52
    %391 = vmatprep.subr.mxu0 0.0
    %392 = vmatpush1.msra.mxu0 %v51
    %393 = vmatprep.subr.mxu0 0.0
    %394 = vmatpush1.msra.mxu0 %v50
    %395 = vmatprep.subr.mxu0 0.0
    %396 = vmatpush1.msra.mxu0 %v49
    %397 = vmatprep.subr.mxu0 0.0
    %398 = vmatpush1.msra.mxu0 %v48
    %399 = vmatprep.subr.mxu0 0.0
    %400 = vmatpush1.msra.mxu0 %v47
    %401 = vmatprep.subr.mxu0 0.0
    %402 = vmatpush1.msra.mxu0 %v46
    %403 = vmatprep.subr.mxu0 0.0
    %404 = vmatpush1.msra.mxu0 %v45
    %405 = vmatprep.subr.mxu0 0.0
    %406 = vmatpush2.msra.mxu0 0.0
    %407 = vmatprep.subr.mxu0 0.0
    %408 = vmatpush2.msra.mxu0 0.0
    %409 = vmatprep.subr.mxu0 0.0
    %410 = vmatpush2.msra.mxu0 0.0
    %411 = vmatprep.subr.mxu0 0.0
    %412 = vmatpush2.msra.mxu0 0.0
    %413 = vmatprep.subr.mxu0 0.0
    %414 = vmatpush2.msra.mxu0 0.0
    %415 = vmatprep.subr.mxu0 0.0
    %416 = vmatpush2.msra.mxu0 0.0
    %417 = vmatprep.subr.mxu0 0.0
    %418 = vmatpush2.msra.mxu0 0.0
    %419 = vmatprep.subr.mxu0 0.0
    %420 = vmatpush2.msra.mxu0 0.0
    %421 = vmatprep.subr.mxu0 0.0
    %422 = vmatpush2.msra.mxu0 0.0
    %423 = vmatprep.subr.mxu0 0.0
    %424 = vmatpush2.msra.mxu0 0.0
    %425 = vmatprep.subr.mxu0 0.0
    %426 = vmatpush2.msra.mxu0 0.0
    %427 = vmatprep.subr.mxu0 0.0
    %428 = vmatpush2.msra.mxu0 0.0
    %429 = vmatprep.subr.mxu0 0.0
    %430 = vmatpush2.msra.mxu0 0.0
    %431 = vmatprep.subr.mxu0 0.0
    %432 = vmatpush2.msra.mxu0 0.0
    %433 = vmatprep.subr.mxu0 0.0
    %434 = vmatpush2.msra.mxu0 0.0
    %435 = vmatprep.subr.mxu0 0.0
    %436 = vmatpush2.msra.mxu0 0.0
    %437 = vmatprep.mubr.f32.mxu0 0.0
    %438 = vmatmul.mubr.f32.gmra.mxu0 %v362
    %v439 = vpop.f32.mrf.mxu0
    %v440 = vadd.f32 %v324, %v439
    %v441 = vpop.f32.mrf.mxu0
    %442 = vmatprep.mubr.f32.mxu0 0.0
    %443 = vmatmul.mubr.f32.gmra.mxu0 %v365
    %v444 = vpop.f32.mrf.mxu0
    %v445 = vadd.f32 %v325, %v444
    %v446 = vpop.f32.mrf.mxu0
    %447 = vmatprep.mubr.f32.mxu0 0.0
    %448 = vmatmul.mubr.f32.gmra.mxu0 %v368
    %v449 = vpop.f32.mrf.mxu0
    %v450 = vadd.f32 %v358, %v449
    %v451 = vpop.f32.mrf.mxu0
    %452 = vmatprep.mubr.f32.mxu0 0.0
    %453 = vmatmul.mubr.f32.gmra.mxu0 %v371
    %v454 = vpop.f32.mrf.mxu0
    %v455 = vadd.f32 %v359, %v454
    %v456 = vpop.f32.mrf.mxu0
    %457 = vdwg.mxu0
    %v458 = vlaneseq
    %v459 = vshrl.u32 %v458, 7
    %v460 = vsub.s32 3, %v459
    %v461 = vrot.slane %v57, %v460
    %v462 = vadd.f32 %v440, %v461
    %v463 = vadd.f32 %v445, %v461
    %v464 = vadd.f32 %v450, %v461
    %v465 = vadd.f32 %v455, %v461
    %v466 = vxor.u32 %v462, 2147483648
    %v467 = vxor.u32 %v463, 2147483648
    %v468 = vxor.u32 %v464, 2147483648
    %v469 = vxor.u32 %v465, 2147483648
    %v470 = vmul.f32 %v466, 1.442695
    %v471 = vpow.pop %v470
    %v472 = vmul.f32 %v467, 1.442695
    %v473 = vpow.pop %v472
    %v474 = vmul.f32 %v468, 1.442695
    %v475 = vpow.pop %v474
    %v476 = vmul.f32 %v469, 1.442695
    %v477 = vpow.pop %v476
    %v478 = vadd.f32 %v471, 1.0
    %v479 = vadd.f32 %v473, 1.0
    %v480 = vadd.f32 %v475, 1.0
    %v481 = vadd.f32 %v477, 1.0
    %v482 = vrcp.pop %v478
    %v483 = vmul.f32 1.0, %v482
    %v484 = vrcp.pop %v479
    %v485 = vmul.f32 1.0, %v484
    %v486 = vrcp.pop %v480
    %v487 = vmul.f32 1.0, %v486
    %v488 = vrcp.pop %v481
    %v489 = vmul.f32 1.0, %v488
    %v490 = vmul.f32 %v483, %v41
    %v491 = vmul.f32 %v485, %v42
    %v492 = vmul.f32 %v487, %v43
    %v493 = vmul.f32 %v489, %v44
    %496 = vrot.lane.b32.xlu0 %v492, 32
    %v497 = vpop.permute.xlu0 %496
    %498 = vrot.lane.b32.xlu0 %v493, 32
    %v499 = vpop.permute.xlu0 %498
    %v502 = vsel %vm67, %v490, %v497
    %v503 = vsel %vm67, %v491, %v499
    %504 = vmatprep.subr.mxu0 0.0
    %505 = vmatpush1.msra.mxu0 0.0
    %506 = vmatprep.subr.mxu0 0.0
    %507 = vmatpush1.msra.mxu0 0.0
    %508 = vmatprep.subr.mxu0 0.0
    %509 = vmatpush1.msra.mxu0 0.0
    %510 = vmatprep.subr.mxu0 0.0
    %511 = vmatpush1.msra.mxu0 0.0
    %512 = vmatprep.subr.mxu0 0.0
    %513 = vmatpush1.msra.mxu0 0.0
    %514 = vmatprep.subr.mxu0 0.0
    %515 = vmatpush1.msra.mxu0 0.0
    %516 = vmatprep.subr.mxu0 0.0
    %517 = vmatpush1.msra.mxu0 0.0
    %518 = vmatprep.subr.mxu0 0.0
    %519 = vmatpush1.msra.mxu0 0.0
    %520 = vmatprep.subr.mxu0 0.0
    %521 = vmatpush1.msra.mxu0 0.0
    %522 = vmatprep.subr.mxu0 0.0
    %523 = vmatpush1.msra.mxu0 0.0
    %524 = vmatprep.subr.mxu0 0.0
    %525 = vmatpush1.msra.mxu0 0.0
    %526 = vmatprep.subr.mxu0 0.0
    %527 = vmatpush1.msra.mxu0 0.0
    %528 = vmatprep.subr.mxu0 0.0
    %529 = vmatpush1.msra.mxu0 0.0
    %530 = vmatprep.subr.mxu0 0.0
    %531 = vmatpush1.msra.mxu0 0.0
    %532 = vmatprep.subr.mxu0 0.0
    %533 = vmatpush1.msra.mxu0 %v503
    %534 = vmatprep.subr.mxu0 0.0
    %535 = vmatpush1.msra.mxu0 %v502
    %536 = vmatprep.subr.mxu0 0.0
    %537 = vmatpush2.msra.mxu0 0.0
    %538 = vmatprep.subr.mxu0 0.0
    %539 = vmatpush2.msra.mxu0 0.0
    %540 = vmatprep.subr.mxu0 0.0
    %541 = vmatpush2.msra.mxu0 0.0
    %542 = vmatprep.subr.mxu0 0.0
    %543 = vmatpush2.msra.mxu0 0.0
    %544 = vmatprep.subr.mxu0 0.0
    %545 = vmatpush2.msra.mxu0 0.0
    %546 = vmatprep.subr.mxu0 0.0
    %547 = vmatpush2.msra.mxu0 0.0
    %548 = vmatprep.subr.mxu0 0.0
    %549 = vmatpush2.msra.mxu0 0.0
    %550 = vmatprep.subr.mxu0 0.0
    %551 = vmatpush2.msra.mxu0 0.0
    %552 = vmatprep.subr.mxu0 0.0
    %553 = vmatpush2.msra.mxu0 0.0
    %554 = vmatprep.subr.mxu0 0.0
    %555 = vmatpush2.msra.mxu0 0.0
    %556 = vmatprep.subr.mxu0 0.0
    %557 = vmatpush2.msra.mxu0 0.0
    %558 = vmatprep.subr.mxu0 0.0
    %559 = vmatpush2.msra.mxu0 0.0
    %560 = vmatprep.subr.mxu0 0.0
    %561 = vmatpush2.msra.mxu0 0.0
    %562 = vmatprep.subr.mxu0 0.0
    %563 = vmatpush2.msra.mxu0 0.0
    %564 = vmatprep.subr.mxu0 0.0
    %565 = vmatpush2.msra.mxu0 0.0
    %566 = vmatprep.subr.mxu0 0.0
    %567 = vmatpush2.msra.mxu0 0.0
    %568 = vmatprep.mubr.f32.mxu0 0.0
    %569 = vmatmul.mubr.f32.gmra.mxu0 %v83
    %v570 = vpop.f32.mrf.mxu0
    %v571 = vadd.f32 0.0, %v570
    %v572 = vpop.f32.mrf.mxu0
    %573 = vmatprep.mubr.f32.mxu0 0.0
    %574 = vmatmul.mubr.f32.gmra.mxu0 %v86
    %v575 = vpop.f32.mrf.mxu0
    %v576 = vadd.f32 0.0, %v575
    %v577 = vpop.f32.mrf.mxu0
    %578 = vdwg.mxu0
    %579 = vmatprep.subr.mxu0 0.0
    %580 = vmatpush1.msra.mxu0 0.0
    %581 = vmatprep.subr.mxu0 0.0
    %582 = vmatpush1.msra.mxu0 0.0
    %583 = vmatprep.subr.mxu0 0.0
    %584 = vmatpush1.msra.mxu0 0.0
    %585 = vmatprep.subr.mxu0 0.0
    %586 = vmatpush1.msra.mxu0 0.0
    %587 = vmatprep.subr.mxu0 0.0
    %588 = vmatpush1.msra.mxu0 0.0
    %589 = vmatprep.subr.mxu0 0.0
    %590 = vmatpush1.msra.mxu0 0.0
    %591 = vmatprep.subr.mxu0 0.0
    %592 = vmatpush1.msra.mxu0 0.0
    %593 = vmatprep.subr.mxu0 0.0
    %594 = vmatpush1.msra.mxu0 0.0
    %595 = vmatprep.subr.mxu0 0.0
    %596 = vmatpush1.msra.mxu0 0.0
    %597 = vmatprep.subr.mxu0 0.0
    %598 = vmatpush1.msra.mxu0 0.0
    %599 = vmatprep.subr.mxu0 0.0
    %600 = vmatpush1.msra.mxu0 0.0
    %601 = vmatprep.subr.mxu0 0.0
    %602 = vmatpush1.msra.mxu0 0.0
    %603 = vmatprep.subr.mxu0 0.0
    %604 = vmatpush1.msra.mxu0 0.0
    %605 = vmatprep.subr.mxu0 0.0
    %606 = vmatpush1.msra.mxu0 0.0
    %607 = vmatprep.subr.mxu0 0.0
    %608 = vmatpush1.msra.mxu0 %v576
    %609 = vmatprep.subr.mxu0 0.0
    %610 = vmatpush1.msra.mxu0 %v571
    %611 = vmatprep.subr.mxu0 0.0
    %612 = vmatpush2.msra.mxu0 0.0
    %613 = vmatprep.subr.mxu0 0.0
    %614 = vmatpush2.msra.mxu0 0.0
    %615 = vmatprep.subr.mxu0 0.0
    %616 = vmatpush2.msra.mxu0 0.0
    %617 = vmatprep.subr.mxu0 0.0
    %618 = vmatpush2.msra.mxu0 0.0
    %619 = vmatprep.subr.mxu0 0.0
    %620 = vmatpush2.msra.mxu0 0.0
    %621 = vmatprep.subr.mxu0 0.0
    %622 = vmatpush2.msra.mxu0 0.0
    %623 = vmatprep.subr.mxu0 0.0
    %624 = vmatpush2.msra.mxu0 0.0
    %625 = vmatprep.subr.mxu0 0.0
    %626 = vmatpush2.msra.mxu0 0.0
    %627 = vmatprep.subr.mxu0 0.0
    %628 = vmatpush2.msra.mxu0 0.0
    %629 = vmatprep.subr.mxu0 0.0
    %630 = vmatpush2.msra.mxu0 0.0
    %631 = vmatprep.subr.mxu0 0.0
    %632 = vmatpush2.msra.mxu0 0.0
    %633 = vmatprep.subr.mxu0 0.0
    %634 = vmatpush2.msra.mxu0 0.0
    %635 = vmatprep.subr.mxu0 0.0
    %636 = vmatpush2.msra.mxu0 0.0
    %637 = vmatprep.subr.mxu0 0.0
    %638 = vmatpush2.msra.mxu0 0.0
    %639 = vmatprep.subr.mxu0 0.0
    %640 = vmatpush2.msra.mxu0 0.0
    %641 = vmatprep.subr.mxu0 0.0
    %642 = vmatpush2.msra.mxu0 0.0
    %643 = vmatprep.mubr.f32.mxu0 0.0
    %644 = vmatmul.mubr.f32.gmra.mxu0 %v83
    %v645 = vpop.f32.mrf.mxu0
    %v646 = vadd.f32 0.0, %v645
    %v647 = vpop.f32.mrf.mxu0
    %648 = vmatprep.mubr.f32.mxu0 0.0
    %649 = vmatmul.mubr.f32.gmra.mxu0 %v86
    %v650 = vpop.f32.mrf.mxu0
    %v651 = vadd.f32 0.0, %v650
    %v652 = vpop.f32.mrf.mxu0
    %653 = vdwg.mxu0
    %v654 = vmul.f32 %v646, 2.0
    %v655 = vmul.f32 %v651, 2.0
    %v656 = vsub.f32 %v654, %v502
    %v657 = vsub.f32 %v655, %v503
    %660 = vrot.lane.b32.xlu0 %v571, 32
    %v661 = vpop.permute.xlu0 %660
    %662 = vrot.lane.b32.xlu0 %v576, 32
    %v663 = vpop.permute.xlu0 %662
    %668 = vrot.lane.b32.xlu0 %v656, 64
    %v669 = vpop.permute.xlu0 %668
    %670 = vrot.lane.b32.xlu0 %v657, 64
    %v671 = vpop.permute.xlu0 %670
    %v674 = vsel %vm67, %v502, %v661
    %v675 = vsel %vm67, %v503, %v663
    %v676 = vsel %vm78, %v674, %v669
    %v677 = vsel %vm78, %v675, %v671
    %680 = vrot.lane.b32.xlu0 %v502, 96
    %v681 = vpop.permute.xlu0 %680
    %682 = vrot.lane.b32.xlu0 %v503, 96
    %v683 = vpop.permute.xlu0 %682
    %686 = vrot.lane.b32.xlu0 %v656, 32
    %v687 = vpop.permute.xlu0 %686
    %688 = vrot.lane.b32.xlu0 %v657, 32
    %v689 = vpop.permute.xlu0 %688
    %v692 = vsel %vm67, %v681, %v571
    %v693 = vsel %vm67, %v683, %v576
    %v694 = vsel %vm78, %v692, %v687
    %v695 = vsel %vm78, %v693, %v689
    %v696 = vlaneseq
    %v697 = vshrl.u32 %v696, 7
    %v698 = vsub.s32 4, %v697
    %v699 = vrot.slane %v57, %v698
    %v700 = vmul.f32 %v282, %v699
    %v701 = vmul.f32 %v286, %v699
    %v702 = vlaneseq
    %v703 = vshrl.u32 %v702, 7
    %v704 = vsub.s32 5, %v703
    %v705 = vrot.slane %v57, %v704
    %v706 = vmul.f32 %v296, %v705
    %v707 = vmul.f32 %v300, %v705
    %v708 = vadd.f32 %v700, %v706
    %v709 = vadd.f32 %v701, %v707
    %v710 = vlaneseq
    %v711 = vshrl.u32 %v710, 7
    %v712 = vsub.s32 6, %v711
    %v713 = vrot.slane %v57, %v712
    %v714 = vmul.f32 %v312, %v713
    %v715 = vmul.f32 %v316, %v713
    %v716 = vadd.f32 %v708, %v714
    %v717 = vadd.f32 %v709, %v715
    %v718 = vmul.f32 %v328, %v699
    %v719 = vmul.f32 %v332, %v699
    %v720 = vmul.f32 %v338, %v705
    %v721 = vmul.f32 %v342, %v705
    %v722 = vadd.f32 %v718, %v720
    %v723 = vadd.f32 %v719, %v721
    %v724 = vmul.f32 %v350, %v713
    %v725 = vmul.f32 %v354, %v713
    %v726 = vadd.f32 %v722, %v724
    %v727 = vadd.f32 %v723, %v725
    %740 = vrot.lane.b32.xlu0 %v45, 64
    %v741 = vpop.permute.xlu0 %740
    %742 = vrot.lane.b32.xlu0 %v46, 64
    %v743 = vpop.permute.xlu0 %742
    %744 = vrot.lane.b32.xlu0 %v47, 64
    %v745 = vpop.permute.xlu0 %744
    %746 = vrot.lane.b32.xlu0 %v48, 64
    %v747 = vpop.permute.xlu0 %746
    %748 = vrot.lane.b32.xlu0 %v49, 64
    %v749 = vpop.permute.xlu0 %748
    %750 = vrot.lane.b32.xlu0 %v50, 64
    %v751 = vpop.permute.xlu0 %750
    %752 = vrot.lane.b32.xlu0 %v51, 64
    %v753 = vpop.permute.xlu0 %752
    %754 = vrot.lane.b32.xlu0 %v52, 64
    %v755 = vpop.permute.xlu0 %754
    %756 = vrot.lane.b32.xlu0 %v53, 64
    %v757 = vpop.permute.xlu0 %756
    %758 = vrot.lane.b32.xlu0 %v54, 64
    %v759 = vpop.permute.xlu0 %758
    %760 = vrot.lane.b32.xlu0 %v55, 64
    %v761 = vpop.permute.xlu0 %760
    %762 = vrot.lane.b32.xlu0 %v56, 64
    %v763 = vpop.permute.xlu0 %762
    %v777 = vsel %vm360, %v676, 0
    %v780 = vsel %vm360, %v677, 0
    %v783 = vsel %vm360, %v694, 0
    %v786 = vsel %vm360, %v695, 0
    %788 = vmatprep.subr.mxu0 0.0
    %789 = vmatpush1.msra.mxu0 0.0
    %790 = vmatprep.subr.mxu0 0.0
    %791 = vmatpush1.msra.mxu0 0.0
    %792 = vmatprep.subr.mxu0 0.0
    %793 = vmatpush1.msra.mxu0 0.0
    %794 = vmatprep.subr.mxu0 0.0
    %795 = vmatpush1.msra.mxu0 0.0
    %796 = vmatprep.subr.mxu0 0.0
    %797 = vmatpush1.msra.mxu0 %v763
    %798 = vmatprep.subr.mxu0 0.0
    %799 = vmatpush1.msra.mxu0 %v761
    %800 = vmatprep.subr.mxu0 0.0
    %801 = vmatpush1.msra.mxu0 %v759
    %802 = vmatprep.subr.mxu0 0.0
    %803 = vmatpush1.msra.mxu0 %v757
    %804 = vmatprep.subr.mxu0 0.0
    %805 = vmatpush1.msra.mxu0 %v755
    %806 = vmatprep.subr.mxu0 0.0
    %807 = vmatpush1.msra.mxu0 %v753
    %808 = vmatprep.subr.mxu0 0.0
    %809 = vmatpush1.msra.mxu0 %v751
    %810 = vmatprep.subr.mxu0 0.0
    %811 = vmatpush1.msra.mxu0 %v749
    %812 = vmatprep.subr.mxu0 0.0
    %813 = vmatpush1.msra.mxu0 %v747
    %814 = vmatprep.subr.mxu0 0.0
    %815 = vmatpush1.msra.mxu0 %v745
    %816 = vmatprep.subr.mxu0 0.0
    %817 = vmatpush1.msra.mxu0 %v743
    %818 = vmatprep.subr.mxu0 0.0
    %819 = vmatpush1.msra.mxu0 %v741
    %820 = vmatprep.subr.mxu0 0.0
    %821 = vmatpush2.msra.mxu0 0.0
    %822 = vmatprep.subr.mxu0 0.0
    %823 = vmatpush2.msra.mxu0 0.0
    %824 = vmatprep.subr.mxu0 0.0
    %825 = vmatpush2.msra.mxu0 0.0
    %826 = vmatprep.subr.mxu0 0.0
    %827 = vmatpush2.msra.mxu0 0.0
    %828 = vmatprep.subr.mxu0 0.0
    %829 = vmatpush2.msra.mxu0 0.0
    %830 = vmatprep.subr.mxu0 0.0
    %831 = vmatpush2.msra.mxu0 0.0
    %832 = vmatprep.subr.mxu0 0.0
    %833 = vmatpush2.msra.mxu0 0.0
    %834 = vmatprep.subr.mxu0 0.0
    %835 = vmatpush2.msra.mxu0 0.0
    %836 = vmatprep.subr.mxu0 0.0
    %837 = vmatpush2.msra.mxu0 0.0
    %838 = vmatprep.subr.mxu0 0.0
    %839 = vmatpush2.msra.mxu0 0.0
    %840 = vmatprep.subr.mxu0 0.0
    %841 = vmatpush2.msra.mxu0 0.0
    %842 = vmatprep.subr.mxu0 0.0
    %843 = vmatpush2.msra.mxu0 0.0
    %844 = vmatprep.subr.mxu0 0.0
    %845 = vmatpush2.msra.mxu0 0.0
    %846 = vmatprep.subr.mxu0 0.0
    %847 = vmatpush2.msra.mxu0 0.0
    %848 = vmatprep.subr.mxu0 0.0
    %849 = vmatpush2.msra.mxu0 0.0
    %850 = vmatprep.subr.mxu0 0.0
    %851 = vmatpush2.msra.mxu0 0.0
    %852 = vmatprep.mubr.f32.mxu0 0.0
    %853 = vmatmul.mubr.f32.gmra.mxu0 %v777
    %v854 = vpop.f32.mrf.mxu0
    %v855 = vadd.f32 %v716, %v854
    %v856 = vpop.f32.mrf.mxu0
    %857 = vmatprep.mubr.f32.mxu0 0.0
    %858 = vmatmul.mubr.f32.gmra.mxu0 %v780
    %v859 = vpop.f32.mrf.mxu0
    %v860 = vadd.f32 %v717, %v859
    %v861 = vpop.f32.mrf.mxu0
    %862 = vmatprep.mubr.f32.mxu0 0.0
    %863 = vmatmul.mubr.f32.gmra.mxu0 %v783
    %v864 = vpop.f32.mrf.mxu0
    %v865 = vadd.f32 %v726, %v864
    %v866 = vpop.f32.mrf.mxu0
    %867 = vmatprep.mubr.f32.mxu0 0.0
    %868 = vmatmul.mubr.f32.gmra.mxu0 %v786
    %v869 = vpop.f32.mrf.mxu0
    %v870 = vadd.f32 %v727, %v869
    %v871 = vpop.f32.mrf.mxu0
    %872 = vdwg.mxu0
    %v873 = vlaneseq
    %v874 = vshrl.u32 %v873, 7
    %v875 = vsub.s32 7, %v874
    %v876 = vrot.slane %v57, %v875
    %v877 = vadd.f32 %v855, %v876
    %v878 = vadd.f32 %v860, %v876
    %v879 = vadd.f32 %v865, %v876
    %v880 = vadd.f32 %v870, %v876
    %v881 = vtanh.pop %v877
    %v882 = vtanh.pop %v878
    %v883 = vtanh.pop %v879
    %v884 = vtanh.pop %v880
    %887 = vrot.lane.b32.xlu0 %v41, 32
    %v888 = vpop.permute.xlu0 %887
    %889 = vrot.lane.b32.xlu0 %v42, 32
    %v890 = vpop.permute.xlu0 %889
    %v893 = vmul.f32 %v483, %v888
    %v894 = vmul.f32 %v485, %v890
    %v895 = vmul.f32 %v487, %v62
    %v896 = vmul.f32 %v489, %v64
    %v897 = vsub.f32 1.0, %v483
    %v898 = vsub.f32 1.0, %v485
    %v899 = vsub.f32 1.0, %v487
    %v900 = vsub.f32 1.0, %v489
    %905 = vrot.lane.b32.xlu0 %v881, 32
    %v906 = vpop.permute.xlu0 %905
    %907 = vrot.lane.b32.xlu0 %v882, 32
    %v908 = vpop.permute.xlu0 %907
    %909 = vrot.lane.b32.xlu0 %v883, 32
    %v910 = vpop.permute.xlu0 %909
    %911 = vrot.lane.b32.xlu0 %v884, 32
    %v912 = vpop.permute.xlu0 %911
    %v917 = vmul.f32 %v897, %v906
    %v918 = vmul.f32 %v898, %v908
    %v919 = vmul.f32 %v899, %v910
    %v920 = vmul.f32 %v900, %v912
    %v921 = vadd.f32 %v893, %v917
    %v922 = vadd.f32 %v894, %v918
    %v923 = vadd.f32 %v895, %v919
    %v924 = vadd.f32 %v896, %v920
    %926 = vrot.lane.b32.xlu0 %v921, 96
    %v927 = vpop.permute.xlu0 %926
    %v929 = vrot.slane %v921, 1
    %v931 = vrot.slane %v921, 2
    %932 = vrot.lane.b32.xlu0 %v931, 32
    %v933 = vpop.permute.xlu0 %932
    %v935 = vrot.slane %v921, 3
    %936 = vrot.lane.b32.xlu0 %v935, 64
    %v937 = vpop.permute.xlu0 %936
    %v939 = vrot.slane %v921, 4
    %940 = vrot.lane.b32.xlu0 %v939, 96
    %v941 = vpop.permute.xlu0 %940
    %v943 = vrot.slane %v921, 5
    %v945 = vrot.slane %v921, 6
    %946 = vrot.lane.b32.xlu0 %v945, 32
    %v947 = vpop.permute.xlu0 %946
    %v949 = vrot.slane %v921, 7
    %950 = vrot.lane.b32.xlu0 %v949, 64
    %v951 = vpop.permute.xlu0 %950
    %954 = vrot.lane.b32.xlu0 %v922, 96
    %v955 = vpop.permute.xlu0 %954
    %v957 = vrot.slane %v922, 1
    %v959 = vrot.slane %v922, 2
    %960 = vrot.lane.b32.xlu0 %v959, 32
    %v961 = vpop.permute.xlu0 %960
    %v963 = vrot.slane %v922, 3
    %964 = vrot.lane.b32.xlu0 %v963, 64
    %v965 = vpop.permute.xlu0 %964
    %v967 = vrot.slane %v922, 4
    %968 = vrot.lane.b32.xlu0 %v967, 96
    %v969 = vpop.permute.xlu0 %968
    %v971 = vrot.slane %v922, 5
    %v973 = vrot.slane %v922, 6
    %974 = vrot.lane.b32.xlu0 %v973, 32
    %v975 = vpop.permute.xlu0 %974
    %v977 = vrot.slane %v922, 7
    %978 = vrot.lane.b32.xlu0 %v977, 64
    %v979 = vpop.permute.xlu0 %978
    %v981 = vsel %vm67, %v927, %v929
    %v982 = vsel %vm78, %v981, %v933
    %v983 = vsel %vm360, %v982, %v937
    %v984 = vsel %vm67, %v941, %v943
    %v985 = vsel %vm78, %v984, %v947
    %v986 = vsel %vm360, %v985, %v951
    %v987 = vsel %vm67, %v955, %v957
    %v988 = vsel %vm78, %v987, %v961
    %v989 = vsel %vm360, %v988, %v965
    %v990 = vsel %vm67, %v969, %v971
    %v991 = vsel %vm78, %v990, %v975
    %v992 = vsel %vm360, %v991, %v979
    %994 = vrot.lane.b32.xlu0 %v923, 96
    %v995 = vpop.permute.xlu0 %994
    %v997 = vrot.slane %v923, 1
    %v999 = vrot.slane %v923, 2
    %1000 = vrot.lane.b32.xlu0 %v999, 32
    %v1001 = vpop.permute.xlu0 %1000
    %v1003 = vrot.slane %v923, 3
    %1004 = vrot.lane.b32.xlu0 %v1003, 64
    %v1005 = vpop.permute.xlu0 %1004
    %v1007 = vrot.slane %v923, 4
    %1008 = vrot.lane.b32.xlu0 %v1007, 96
    %v1009 = vpop.permute.xlu0 %1008
    %v1011 = vrot.slane %v923, 5
    %v1013 = vrot.slane %v923, 6
    %1014 = vrot.lane.b32.xlu0 %v1013, 32
    %v1015 = vpop.permute.xlu0 %1014
    %v1017 = vrot.slane %v923, 7
    %1018 = vrot.lane.b32.xlu0 %v1017, 64
    %v1019 = vpop.permute.xlu0 %1018
    %1022 = vrot.lane.b32.xlu0 %v924, 96
    %v1023 = vpop.permute.xlu0 %1022
    %v1025 = vrot.slane %v924, 1
    %v1027 = vrot.slane %v924, 2
    %1028 = vrot.lane.b32.xlu0 %v1027, 32
    %v1029 = vpop.permute.xlu0 %1028
    %v1031 = vrot.slane %v924, 3
    %1032 = vrot.lane.b32.xlu0 %v1031, 64
    %v1033 = vpop.permute.xlu0 %1032
    %v1035 = vrot.slane %v924, 4
    %1036 = vrot.lane.b32.xlu0 %v1035, 96
    %v1037 = vpop.permute.xlu0 %1036
    %v1039 = vrot.slane %v924, 5
    %v1041 = vrot.slane %v924, 6
    %1042 = vrot.lane.b32.xlu0 %v1041, 32
    %v1043 = vpop.permute.xlu0 %1042
    %v1045 = vrot.slane %v924, 7
    %1046 = vrot.lane.b32.xlu0 %v1045, 64
    %v1047 = vpop.permute.xlu0 %1046
    %v1049 = vsel %vm67, %v995, %v997
    %v1050 = vsel %vm78, %v1049, %v1001
    %v1051 = vsel %vm360, %v1050, %v1005
    %v1052 = vsel %vm67, %v1009, %v1011
    %v1053 = vsel %vm78, %v1052, %v1015
    %v1054 = vsel %vm360, %v1053, %v1019
    %v1055 = vsel %vm67, %v1023, %v1025
    %v1056 = vsel %vm78, %v1055, %v1029
    %v1057 = vsel %vm360, %v1056, %v1033
    %v1058 = vsel %vm67, %v1037, %v1039
    %v1059 = vsel %vm78, %v1058, %v1043
    %v1060 = vsel %vm360, %v1059, %v1047
    %v1065 = vrot.slane %v1051, 7
    %v1066 = vrot.slane %v1054, 7
    %v1067 = vrot.slane %v1057, 7
    %v1068 = vrot.slane %v1060, 7
    %vm1073 = vcmask 1040384
    %v1074 = vsel %vm1073, %v983, %v1065
    %v1075 = vsel %vm1073, %v986, %v1066
    %v1076 = vsel %vm1073, %v989, %v1067
    %v1077 = vsel %vm1073, %v992, %v1068
    %v1082 = vcombine.low %v1074, %v1075
    %v1083 = vcombine.low %v1076, %v1077
    %v1085 = vunpack.c.l.s4 1983009808
    %v1086 = vunpack.c.0.s8 %v1085
    %v1087 = vlaneseq
    %v1088 = vshrl.u32 %v1087, 7
    %v1089 = vsub.s32 %v1086, %v1088
    %v1090 = vrot.slane %v1082, %v1089
    %v1092 = vunpack.c.l.s4 1983009808
    %v1093 = vunpack.c.0.s8 %v1092
    %v1094 = vlaneseq
    %v1095 = vshrl.u32 %v1094, 7
    %v1096 = vsub.s32 %v1093, %v1095
    %v1097 = vrot.slane %v1083, %v1096
    %v1098 = vcombine.low %v1090, %v1097
    %1100 = vst [vmem:[#allocation5] sm:$0xff] %v1098
    %v1101 = vlaneseq
    %v1102 = vshrl.u32 %v1101, 7
    %v1103 = vsub.s32 0, %v1102
    %v1104 = vrot.slane %v58, %v1103
    %1106 = vrot.lane.b32.xlu0 %v1104, 32
    %v1107 = vpop.permute.xlu0 %1106
    %v1109 = vmul.f32 %v921, %v1107
    %v1110 = vmul.f32 %v922, %v1107
    %v1111 = vmul.f32 %v923, %v1107
    %v1112 = vmul.f32 %v924, %v1107
    %1117 = vrot.lane.b32.xlu0 %v1109, 96
    %v1118 = vpop.permute.xlu0 %1117
    %1119 = vrot.lane.b32.xlu0 %v1110, 96
    %v1120 = vpop.permute.xlu0 %1119
    %1121 = vrot.lane.b32.xlu0 %v1111, 96
    %v1122 = vpop.permute.xlu0 %1121
    %1123 = vrot.lane.b32.xlu0 %v1112, 96
    %v1124 = vpop.permute.xlu0 %1123
    %v1129 = vsel %vm67, %v1118, 0.0
    %1130 = vadd.xlane.f32.xlu0 %v1129
    %v1131 = vpop.xlane.xlu0 %1130
    %v1132 = vsel %vm67, %v1120, 0.0
    %1133 = vadd.xlane.f32.xlu0 %v1132
    %v1134 = vpop.xlane.xlu0 %1133
    %v1135 = vsel %vm67, %v1122, 0.0
    %1136 = vadd.xlane.f32.xlu0 %v1135
    %v1137 = vpop.xlane.xlu0 %1136
    %v1138 = vsel %vm67, %v1124, 0.0
    %1139 = vadd.xlane.f32.xlu0 %v1138
    %v1140 = vpop.xlane.xlu0 %1139
    %v1141 = vlaneseq
    %v1142 = vshrl.u32 %v1141, 7
    %v1143 = vsub.s32 1, %v1142
    %v1144 = vrot.slane %v58, %v1143
    %v1145 = vadd.f32 %v1131, %v1144
    %v1146 = vadd.f32 %v1134, %v1144
    %v1147 = vadd.f32 %v1137, %v1144
    %v1148 = vadd.f32 %v1140, %v1144
    %vm1149 = vcmask 7168
    %1150 = vst.msk [vmem:[%s6] sm:$0xff] %vm1149, %v1145
    %1151 = vst.msk [vmem:[%s6 + $0x8] sm:$0xff] %vm1149, %v1146
    %1152 = vst.msk [vmem:[%s6 + $0x10] sm:$0xff] %vm1149, %v1147
    %1153 = vst.msk [vmem:[%s6 + $0x18] sm:$0xff] %vm1149, %v1148
    // Predicated region
    $region26: #{decoder_forward.1} parent=1 // pred_check
      _
    $region27: #{decoder_forward.1} parent=1 // pred_check_branch
      %1155 = sbr.rel (0) target = $region29
    $region28: #{decoder_forward.1} parent=1 // pred_region
      %s1157 = ssub.s32 128, 128
      %1158 = vsyncadd [#allocation4], %s1157
      %s1160 = sshll.u32 [#allocation5], 4
      %s1161 = int_to_ptr.vmem [resolvable:$true] %s1160
      %1163 = dma.vmem_to_hbm [thread:$0]  %s1161, 128, %s5, [#allocation4]
    $region29: #{decoder_forward.1} parent=1 // pred_fallthru
      _
    // Predicated region
    $region30: #{decoder_forward.1} parent=1 // pred_check
      _
    $region31: #{decoder_forward.1} parent=1 // pred_check_branch
      %1165 = sbr.rel (0) target = $region33
    $region32: #{decoder_forward.1} parent=1 // pred_region
      _
    $region33: #{decoder_forward.1} parent=1 // pred_fallthru
      _
    // Predicated region
    $region34: #{decoder_forward.1} parent=1 // pred_check
      _
    $region35: #{decoder_forward.1} parent=1 // pred_check_branch
      %1167 = sbr.rel (0) target = $region37
    $region36: #{decoder_forward.1} parent=1 // pred_region
      %1168 = dma.done [#allocation4], 128
    $region37: #{decoder_forward.1} parent=1 // pred_fallthru
      _
    // Predicated region
    $region38: #{decoder_forward.1} parent=1 // pred_check
      _
    $region39: #{decoder_forward.1} parent=1 // pred_check_branch
      %1170 = sbr.rel (0) target = $region41
    $region40: #{decoder_forward.1} parent=1 // pred_region
      _
    $region41: #{decoder_forward.1} parent=1 // pred_fallthru
      _
    %1171 = vsyncpa [#allocation3], 1
    %1172 = vsyncpa [#allocation4], 1

</llo_original>
